<compile_context>
chip_gen: v6e
topology: v6e:2x2x1
jax: 0.10.0
libtpu: 0.0.40
codegen_flags: <defaults>
</compile_context>

<pallas_src>
import functools
import math
from typing import NamedTuple

import jax
import jax.numpy as jnp
from jax import lax
from jax.experimental import pallas as pl
from jax.experimental.pallas import tpu as pltpu


_LANE = 128     # lane width: every last dim padded to a multiple of this


def _round_up(x, m):
    return ((x + m - 1) // m) * m


def _pad_last2(a, rows, cols):
    """Zero-pad the last two dims of `a` up to (rows, cols)."""
    pr = rows - a.shape[-2]
    pc = cols - a.shape[-1]
    if pr == 0 and pc == 0:
        return a
    pad = [(0, 0)] * (a.ndim - 2) + [(0, pr), (0, pc)]
    return jnp.pad(a, pad)


def _tpu_info():
    """(vmem_capacity_bytes, num_tensorcores_per_chip) with safe fallbacks."""
    vmem_cap = 64 * 1024 * 1024   # conservative default (v7x per-TC)
    num_tc = 1
    try:
        info = pltpu.get_tpu_info()
        vmem_cap = int(getattr(info, "vmem_capacity_bytes", vmem_cap))
    except Exception:
        pass
    try:
        kind = jax.devices()[0].device_kind.lower()
    except Exception:
        kind = ""
    if "v7" in kind:
        num_tc = 2
    return vmem_cap, num_tc


# --------------------------------------------------------------------------- #
# Kernel
# --------------------------------------------------------------------------- #
def _multi_residual_kernel(x_ref, w_in_ref, b_in_ref,
                           w1_ref, b1_ref, w2_ref, b2_ref,
                           w_out_ref, b_out_ref, o_ref,
                           *, num_layers, split, unroll_layers):
    wdt = w_in_ref.dtype  # MXU input dtype (f32 or bf16); accumulation is f32

    # Two independent row sub-chains (ping-pong): the VPU bias/ReLU/cast of one
    # sub-chain hides under the MXU matmul of the other.
    if split:
        xs = (x_ref[:split, :], x_ref[split:, :])
    else:
        xs = (x_ref[...],)

    # in_linear: [rows, in_p] @ [in_p, res_p] + [1, res_p]
    outs = tuple(jnp.dot(x, w_in_ref[...], preferred_element_type=jnp.float32)
                 + b_in_ref[...] for x in xs)

    def res_layer(outs, w1, b1, w2, b2):
        hs = tuple(jnp.dot(o.astype(wdt), w1, preferred_element_type=jnp.float32)
                   for o in outs)
        hs = tuple(jnp.maximum(h + b1, 0.0) for h in hs)
        gs = tuple(jnp.dot(h.astype(wdt), w2, preferred_element_type=jnp.float32)
                   for h in hs)
        return tuple(jnp.maximum(g + b2, 0.0) + o for g, o in zip(gs, outs))

    if unroll_layers:
        for l in range(num_layers):
            outs = res_layer(outs, w1_ref[l], b1_ref[l], w2_ref[l], b2_ref[l])
    else:
        def body(l, carry):
            return res_layer(carry, w1_ref[l], b1_ref[l], w2_ref[l], b2_ref[l])
        outs = lax.fori_loop(0, num_layers, body, outs, unroll=2)

    # out_linear: [rows, res_p] @ [res_p, out_p] + [1, out_p]
    res = tuple((jnp.dot(o.astype(wdt), w_out_ref[...],
                         preferred_element_type=jnp.float32)
                 + b_out_ref[...]).astype(o_ref.dtype) for o in outs)
    if split:
        o_ref[:split, :] = res[0]
        o_ref[split:, :] = res[1]
    else:
        o_ref[...] = res[0]


# --------------------------------------------------------------------------- #
# Parameter preparation (done ONCE, hoisted out of the forward path)
# --------------------------------------------------------------------------- #
class PreparedParams(NamedTuple):
    w_in: jax.Array
    b_in: jax.Array
    w1: jax.Array
    b1: jax.Array
    w2: jax.Array
    b2: jax.Array
    w_out: jax.Array
    b_out: jax.Array
    in_dim: int
    out_dim: int
    num_layers: int


def prepare_params(params, *, compute_dtype=None):
    """Pad every feature dim to a multiple of 128 and cast weights to the
    compute dtype ONCE. compute_dtype=jnp.bfloat16 is recommended on all of
    v5e/v6e/v7x (MXU-native inputs); accumulation stays float32 regardless."""
    w_in, b_in, w1s, b1s, w2s, b2s, w_out, b_out = params
    in_dim, res_dim = w_in.shape
    out_dim = w_out.shape[1]
    L = w1s.shape[0]

    wdt = jnp.dtype(compute_dtype) if compute_dtype is not None else jnp.dtype(w_in.dtype)
    in_p = _round_up(in_dim, _LANE)
    res_p = _round_up(res_dim, _LANE)
    out_p = _round_up(out_dim, _LANE)

    return PreparedParams(
        w_in=_pad_last2(w_in, in_p, res_p).astype(wdt),
        b_in=_pad_last2(b_in, 1, res_p).astype(jnp.float32),
        w1=_pad_last2(w1s, res_p, res_p).astype(wdt),
        b1=_pad_last2(b1s, 1, res_p).astype(jnp.float32),
        w2=_pad_last2(w2s, res_p, res_p).astype(wdt),
        b2=_pad_last2(b2s, 1, res_p).astype(jnp.float32),
        w_out=_pad_last2(w_out, res_p, out_p).astype(wdt),
        b_out=_pad_last2(b_out, 1, out_p).astype(jnp.float32),
        in_dim=in_dim, out_dim=out_dim, num_layers=L)


# --------------------------------------------------------------------------- #
# Forward
# --------------------------------------------------------------------------- #
def multi_residual_forward(x, prepped: PreparedParams, *, tm=None, out_dtype=None,
                           unroll_layers=None, vmem_limit_bytes=None):
    """x: [..., in_dim] -> [..., out_dim] using pre-padded/cast weights.

    out_dtype: output dtype (default x.dtype); pass jnp.bfloat16 in bf16 mode
    to halve output store bandwidth.
    """
    p = prepped
    wdt = jnp.dtype(p.w_in.dtype)
    in_p, res_p = p.w_in.shape
    out_p = p.w_out.shape[1]
    L = p.num_layers
    out_dt = jnp.dtype(out_dtype) if out_dtype is not None else jnp.dtype(x.dtype)

    vmem_cap, num_tc = _tpu_info()

    if tm is None:
        # Bigger row tiles amortize per-grid-step overhead where VMEM permits.
        tm = 512 if vmem_cap >= 96 * 1024 * 1024 else 256
    if unroll_layers is None:
        unroll_layers = L <= 8

    # ---- flatten leading dims to rows and pick the row tile ----
    lead_shape = x.shape[:-1]
    n_rows = math.prod(lead_shape) if lead_shape else 1
    x2d = x.reshape(n_rows, p.in_dim)

    # Packed-sublane alignment for the compute dtype (8 f32 / 16 bf16 / 32 int8).
    sub = {4: 8, 2: 16, 1: 32}.get(wdt.itemsize, 8)
    rows_al = _round_up(max(n_rows, 1), sub)
    tm_eff = max(sub, min(tm, rows_al))
    # Force >= num_tc row tiles only where there are >= 2 TensorCores (v7x).
    if num_tc >= 2 and rows_al >= 2 * _LANE:
        tm_eff = min(tm_eff, _round_up(pl.cdiv(rows_al, num_tc), sub))
    tm_eff = _round_up(tm_eff, sub)

    n_pad = pl.cdiv(rows_al, tm_eff) * tm_eff
    x2d = jnp.pad(x2d, ((0, n_pad - n_rows), (0, in_p - p.in_dim))).astype(wdt)
    grid = (n_pad // tm_eff,)

    # Ping-pong split of the row tile into two sub-chains (keep halves aligned).
    split = tm_eff // 2 if (tm_eff >= 2 * sub and (tm_eff // 2) % sub == 0) else 0

    # ---- VMEM budget, resident-weight guard, cost estimate ----
    weights = (p.w_in, p.b_in, p.w1, p.b1, p.w2, p.b2, p.w_out, p.b_out)
    weight_bytes = sum(int(a.size) * a.dtype.itemsize for a in weights)
    x_tile_bytes = 2 * tm_eff * in_p * wdt.itemsize        # double-buffered input tile
    o_tile_bytes = 2 * tm_eff * out_p * out_dt.itemsize    # double-buffered output tile
    live_bytes = 6 * tm_eff * res_p * 4                    # f32 intermediates (2 chains)
    needed = weight_bytes + x_tile_bytes + o_tile_bytes + live_bytes + (4 << 20)

    cap = max(vmem_cap - (16 << 20), 32 << 20)             # generation-aware ceiling
    if needed > cap:
        # TODO(synk): fall back to per-layer weight streaming instead of raising.
        raise ValueError(
            f"Resident weights + tiles need ~{needed >> 20} MiB VMEM but only "
            f"~{cap >> 20} MiB is available on this chip; reduce res_dim / "
            f"num_layers / tm or add a layer-streaming variant.")
    if vmem_limit_bytes is None:
        vmem_limit_bytes = min(cap, max(needed + (8 << 20), 32 << 20))

    flops = 2 * n_pad * (in_p * res_p + 2 * L * res_p * res_p + res_p * out_p)
    bytes_accessed = (int(x2d.size) * wdt.itemsize + weight_bytes
                      + n_pad * out_p * out_dt.itemsize)
    cost = pl.CostEstimate(flops=int(flops), transcendentals=0,
                           bytes_accessed=int(bytes_accessed))

    # Constant-index (fully resident) operands: single-buffer them; double
    # buffering would only double their VMEM footprint.
    def _const(shape):
        return pl.BlockSpec(shape, lambda *_: (0,) * len(shape),
                            pipeline_mode=pl.Buffered(1))

    kernel = functools.partial(_multi_residual_kernel, num_layers=L,
                               split=split, unroll_layers=unroll_layers)

    out2d = pl.pallas_call(
        kernel,
        out_shape=jax.ShapeDtypeStruct((n_pad, out_p), out_dt),
        grid_spec=pltpu.PrefetchScalarGridSpec(
            num_scalar_prefetch=0,
            grid=grid,
            in_specs=[
                pl.BlockSpec((tm_eff, in_p), lambda i: (i, 0)),   # x row tile
                _const((in_p, res_p)),                            # w_in
                _const((1, res_p)),                               # b_in
                _const((L, res_p, res_p)),                        # w1 stacked
                _const((L, 1, res_p)),                            # b1 stacked
                _const((L, res_p, res_p)),                        # w2 stacked
                _const((L, 1, res_p)),                            # b2 stacked
                _const((res_p, out_p)),                           # w_out
                _const((1, out_p)),                               # b_out
            ],
            out_specs=pl.BlockSpec((tm_eff, out_p), lambda i: (i, 0)),
        ),
        compiler_params=pltpu.CompilerParams(
            dimension_semantics=("parallel",),
            vmem_limit_bytes=int(vmem_limit_bytes)),
        cost_estimate=cost,
    )(x2d, *weights)

    return out2d[:n_rows, :p.out_dim].reshape(*lead_shape, p.out_dim)


# --------------------------------------------------------------------------- #
# Init + pure-JAX reference
# --------------------------------------------------------------------------- #
def init_params(key, in_dim, res_dim, out_dim, num_layers):
    """nn.Linear-style init (uniform +-1/sqrt(fan_in)); weights pre-transposed
    to [in_features, out_features]."""
    keys = jax.random.split(key, 4 + 4 * num_layers)
    ki = iter(range(len(keys)))

    def linear(k_w, k_b, fan_in, fan_out):
        bound = 1.0 / jnp.sqrt(fan_in)
        w = jax.random.uniform(k_w, (fan_in, fan_out), jnp.float32, -bound, bound)
        b = jax.random.uniform(k_b, (1, fan_out), jnp.float32, -bound, bound)
        return w, b

    w_in, b_in = linear(keys[next(ki)], keys[next(ki)], in_dim, res_dim)

    w1_list, b1_list, w2_list, b2_list = [], [], [], []
    for _ in range(num_layers):
        w1, b1 = linear(keys[next(ki)], keys[next(ki)], res_dim, res_dim)
        w2, b2 = linear(keys[next(ki)], keys[next(ki)], res_dim, res_dim)
        w1_list.append(w1); b1_list.append(b1)
        w2_list.append(w2); b2_list.append(b2)
    w1s = jnp.stack(w1_list)                      # [L, res_dim, res_dim]
    b1s = jnp.stack(b1_list)                      # [L, 1, res_dim]
    w2s = jnp.stack(w2_list)
    b2s = jnp.stack(b2_list)

    w_out, b_out = linear(keys[next(ki)], keys[next(ki)], res_dim, out_dim)
    return (w_in, b_in, w1s, b1s, w2s, b2s, w_out, b_out)


def reference_forward(x, params, *, num_layers):
    w_in, b_in, w1s, b1s, w2s, b2s, w_out, b_out = params
    out = x @ w_in + b_in[0]
    for l in range(num_layers):
        h = jnp.maximum(out @ w1s[l] + b1s[l, 0], 0.0)
        h = jnp.maximum(h @ w2s[l] + b2s[l, 0], 0.0)
        out = h + out
    return out @ w_out + b_out[0]


if __name__ == "__main__":
    in_dim, res_dim, out_dim, num_layers = 32, 64, 48, 3
    batch, seq = 2, 8

    key = jax.random.PRNGKey(0)
    k_params, k_x = jax.random.split(key)
    params = init_params(k_params, in_dim, res_dim, out_dim, num_layers)
    x = jax.random.normal(k_x, (batch, seq, in_dim), jnp.float32)

    ref = reference_forward(x, params, num_layers=num_layers)

    # f32 path, unrolled residual stack (exercises the ping-pong split).
    prep_f32 = prepare_params(params)
    out = jax.block_until_ready(multi_residual_forward(x, prep_f32))
    assert out.shape == (batch, seq, out_dim), out.shape
    assert jnp.allclose(out, ref, atol=1e-4, rtol=1e-4), \
        float(jnp.max(jnp.abs(out - ref)))

    # f32 path with lax.fori_loop over layers (dynamic layer indexing).
    out_fori = jax.block_until_ready(
        multi_residual_forward(x, prep_f32, unroll_layers=False))
    assert jnp.allclose(out_fori, ref, atol=1e-4, rtol=1e-4), \
        float(jnp.max(jnp.abs(out_fori - ref)))

    # bf16-weight path (recommended on v5e/v6e/v7x): f32 accumulation,
    # bf16 output, loose tolerance.
    prep_bf16 = prepare_params(params, compute_dtype=jnp.bfloat16)
    out_bf16 = jax.block_until_ready(
        multi_residual_forward(x, prep_bf16, out_dtype=jnp.bfloat16))
    max_err = float(jnp.max(jnp.abs(out_bf16.astype(jnp.float32) - ref)))
    ref_mag = float(jnp.max(jnp.abs(ref)))
    assert max_err < 0.1 * (ref_mag + 1.0), (max_err, ref_mag)

    print("KERNEL_OK")
</pallas_src>

<mosaic_0001>
module attributes {stable_mosaic.version = 11 : i64} {
  func.func @_multi_residual_kernel(%arg0: i32, %arg1: memref<16x128xf32, #tpu.memory_space<vmem>>, %arg2: memref<128x128xf32, #tpu.memory_space<vmem>>, %arg3: memref<1x128xf32, #tpu.memory_space<vmem>>, %arg4: memref<3x128x128xf32, #tpu.memory_space<vmem>>, %arg5: memref<3x1x128xf32, #tpu.memory_space<vmem>>, %arg6: memref<3x128x128xf32, #tpu.memory_space<vmem>>, %arg7: memref<3x1x128xf32, #tpu.memory_space<vmem>>, %arg8: memref<128x128xf32, #tpu.memory_space<vmem>>, %arg9: memref<1x128xf32, #tpu.memory_space<vmem>>, %arg10: memref<16x128xf32, #tpu.memory_space<vmem>>) attributes {dimension_semantics = [#tpu.dimension_semantics<parallel>], iteration_bounds = array<i64: 1>, scalar_prefetch = 0 : i64, scratch_operands = 0 : i64, tpu.core_type = #tpu.core_type<tc>, window_params = [{transform_indices = @transform_0, window_bounds = array<i64: 16, 128>}, {pipeline_mode = #tpu.pipeline_mode<synchronous>, transform_indices = @transform_1, window_bounds = array<i64: 128, 128>}, {pipeline_mode = #tpu.pipeline_mode<synchronous>, transform_indices = @transform_2, window_bounds = array<i64: 1, 128>}, {pipeline_mode = #tpu.pipeline_mode<synchronous>, transform_indices = @transform_3, window_bounds = array<i64: 3, 128, 128>}, {pipeline_mode = #tpu.pipeline_mode<synchronous>, transform_indices = @transform_4, window_bounds = array<i64: 3, 1, 128>}, {pipeline_mode = #tpu.pipeline_mode<synchronous>, transform_indices = @transform_5, window_bounds = array<i64: 3, 128, 128>}, {pipeline_mode = #tpu.pipeline_mode<synchronous>, transform_indices = @transform_6, window_bounds = array<i64: 3, 1, 128>}, {pipeline_mode = #tpu.pipeline_mode<synchronous>, transform_indices = @transform_7, window_bounds = array<i64: 128, 128>}, {pipeline_mode = #tpu.pipeline_mode<synchronous>, transform_indices = @transform_8, window_bounds = array<i64: 1, 128>}, {transform_indices = @transform_9, window_bounds = array<i64: 16, 128>}]} {
    %c0 = arith.constant 0 : index
    %c0_0 = arith.constant 0 : index
    %0 = vector.load %arg1[%c0, %c0_0] : memref<16x128xf32, #tpu.memory_space<vmem>>, vector<8x128xf32>
    %c8 = arith.constant 8 : index
    %c0_1 = arith.constant 0 : index
    %1 = vector.load %arg1[%c8, %c0_1] : memref<16x128xf32, #tpu.memory_space<vmem>>, vector<8x128xf32>
    %c0_2 = arith.constant 0 : index
    %c0_3 = arith.constant 0 : index
    %2 = vector.load %arg2[%c0_2, %c0_3] : memref<128x128xf32, #tpu.memory_space<vmem>>, vector<128x128xf32>
    %cst = arith.constant dense<0.000000e+00> : vector<8x128xf32>
    %3 = tpu.matmul %0, %2, %cst {dimension_numbers = #tpu.dot_dimension_numbers<[1], [0], [0], [1], [0, 0, 1, 1], [], []>} : vector<8x128xf32>, vector<128x128xf32>, vector<8x128xf32> -> vector<8x128xf32>
    %c0_4 = arith.constant 0 : index
    %c0_5 = arith.constant 0 : index
    %4 = vector.load %arg3[%c0_4, %c0_5] : memref<1x128xf32, #tpu.memory_space<vmem>>, vector<1x128xf32>
    %5 = vector.broadcast %4 : vector<1x128xf32> to vector<8x128xf32>
    %6 = arith.addf %3, %5 : vector<8x128xf32>
    %c0_6 = arith.constant 0 : index
    %c0_7 = arith.constant 0 : index
    %7 = vector.load %arg2[%c0_6, %c0_7] : memref<128x128xf32, #tpu.memory_space<vmem>>, vector<128x128xf32>
    %cst_8 = arith.constant dense<0.000000e+00> : vector<8x128xf32>
    %8 = tpu.matmul %1, %7, %cst_8 {dimension_numbers = #tpu.dot_dimension_numbers<[1], [0], [0], [1], [0, 0, 1, 1], [], []>} : vector<8x128xf32>, vector<128x128xf32>, vector<8x128xf32> -> vector<8x128xf32>
    %c0_9 = arith.constant 0 : index
    %c0_10 = arith.constant 0 : index
    %9 = vector.load %arg3[%c0_9, %c0_10] : memref<1x128xf32, #tpu.memory_space<vmem>>, vector<1x128xf32>
    %10 = vector.broadcast %9 : vector<1x128xf32> to vector<8x128xf32>
    %11 = arith.addf %8, %10 : vector<8x128xf32>
    %c0_11 = arith.constant 0 : index
    %c0_12 = arith.constant 0 : index
    %c0_13 = arith.constant 0 : index
    %12 = vector.load %arg4[%c0_11, %c0_12, %c0_13] : memref<3x128x128xf32, #tpu.memory_space<vmem>>, vector<1x128x128xf32>
    %13 = vector.shape_cast %12 : vector<1x128x128xf32> to vector<128x128xf32>
    %c0_14 = arith.constant 0 : index
    %c0_15 = arith.constant 0 : index
    %c0_16 = arith.constant 0 : index
    %14 = vector.load %arg5[%c0_14, %c0_15, %c0_16] : memref<3x1x128xf32, #tpu.memory_space<vmem>>, vector<1x1x128xf32>
    %15 = vector.shape_cast %14 : vector<1x1x128xf32> to vector<1x128xf32>
    %c0_17 = arith.constant 0 : index
    %c0_18 = arith.constant 0 : index
    %c0_19 = arith.constant 0 : index
    %16 = vector.load %arg6[%c0_17, %c0_18, %c0_19] : memref<3x128x128xf32, #tpu.memory_space<vmem>>, vector<1x128x128xf32>
    %17 = vector.shape_cast %16 : vector<1x128x128xf32> to vector<128x128xf32>
    %c0_20 = arith.constant 0 : index
    %c0_21 = arith.constant 0 : index
    %c0_22 = arith.constant 0 : index
    %18 = vector.load %arg7[%c0_20, %c0_21, %c0_22] : memref<3x1x128xf32, #tpu.memory_space<vmem>>, vector<1x1x128xf32>
    %19 = vector.shape_cast %18 : vector<1x1x128xf32> to vector<1x128xf32>
    %cst_23 = arith.constant dense<0.000000e+00> : vector<8x128xf32>
    %20 = tpu.matmul %6, %13, %cst_23 {dimension_numbers = #tpu.dot_dimension_numbers<[1], [0], [0], [1], [0, 0, 1, 1], [], []>} : vector<8x128xf32>, vector<128x128xf32>, vector<8x128xf32> -> vector<8x128xf32>
    %cst_24 = arith.constant dense<0.000000e+00> : vector<8x128xf32>
    %21 = tpu.matmul %11, %13, %cst_24 {dimension_numbers = #tpu.dot_dimension_numbers<[1], [0], [0], [1], [0, 0, 1, 1], [], []>} : vector<8x128xf32>, vector<128x128xf32>, vector<8x128xf32> -> vector<8x128xf32>
    %22 = vector.broadcast %15 : vector<1x128xf32> to vector<8x128xf32>
    %23 = arith.addf %20, %22 : vector<8x128xf32>
    %cst_25 = arith.constant 0.000000e+00 : f32
    %24 = vector.broadcast %cst_25 : f32 to vector<8x128xf32>
    %25 = arith.maximumf %23, %24 : vector<8x128xf32>
    %26 = vector.broadcast %15 : vector<1x128xf32> to vector<8x128xf32>
    %27 = arith.addf %21, %26 : vector<8x128xf32>
    %cst_26 = arith.constant 0.000000e+00 : f32
    %28 = vector.broadcast %cst_26 : f32 to vector<8x128xf32>
    %29 = arith.maximumf %27, %28 : vector<8x128xf32>
    %cst_27 = arith.constant dense<0.000000e+00> : vector<8x128xf32>
    %30 = tpu.matmul %25, %17, %cst_27 {dimension_numbers = #tpu.dot_dimension_numbers<[1], [0], [0], [1], [0, 0, 1, 1], [], []>} : vector<8x128xf32>, vector<128x128xf32>, vector<8x128xf32> -> vector<8x128xf32>
    %cst_28 = arith.constant dense<0.000000e+00> : vector<8x128xf32>
    %31 = tpu.matmul %29, %17, %cst_28 {dimension_numbers = #tpu.dot_dimension_numbers<[1], [0], [0], [1], [0, 0, 1, 1], [], []>} : vector<8x128xf32>, vector<128x128xf32>, vector<8x128xf32> -> vector<8x128xf32>
    %32 = vector.broadcast %19 : vector<1x128xf32> to vector<8x128xf32>
    %33 = arith.addf %30, %32 : vector<8x128xf32>
    %cst_29 = arith.constant 0.000000e+00 : f32
    %34 = vector.broadcast %cst_29 : f32 to vector<8x128xf32>
    %35 = arith.maximumf %33, %34 : vector<8x128xf32>
    %36 = arith.addf %35, %6 : vector<8x128xf32>
    %37 = vector.broadcast %19 : vector<1x128xf32> to vector<8x128xf32>
    %38 = arith.addf %31, %37 : vector<8x128xf32>
    %cst_30 = arith.constant 0.000000e+00 : f32
    %39 = vector.broadcast %cst_30 : f32 to vector<8x128xf32>
    %40 = arith.maximumf %38, %39 : vector<8x128xf32>
    %41 = arith.addf %40, %11 : vector<8x128xf32>
    %c1 = arith.constant 1 : index
    %c0_31 = arith.constant 0 : index
    %c0_32 = arith.constant 0 : index
    %42 = vector.load %arg4[%c1, %c0_31, %c0_32] : memref<3x128x128xf32, #tpu.memory_space<vmem>>, vector<1x128x128xf32>
    %43 = vector.shape_cast %42 : vector<1x128x128xf32> to vector<128x128xf32>
    %c1_33 = arith.constant 1 : index
    %c0_34 = arith.constant 0 : index
    %c0_35 = arith.constant 0 : index
    %44 = vector.load %arg5[%c1_33, %c0_34, %c0_35] : memref<3x1x128xf32, #tpu.memory_space<vmem>>, vector<1x1x128xf32>
    %45 = vector.shape_cast %44 : vector<1x1x128xf32> to vector<1x128xf32>
    %c1_36 = arith.constant 1 : index
    %c0_37 = arith.constant 0 : index
    %c0_38 = arith.constant 0 : index
    %46 = vector.load %arg6[%c1_36, %c0_37, %c0_38] : memref<3x128x128xf32, #tpu.memory_space<vmem>>, vector<1x128x128xf32>
    %47 = vector.shape_cast %46 : vector<1x128x128xf32> to vector<128x128xf32>
    %c1_39 = arith.constant 1 : index
    %c0_40 = arith.constant 0 : index
    %c0_41 = arith.constant 0 : index
    %48 = vector.load %arg7[%c1_39, %c0_40, %c0_41] : memref<3x1x128xf32, #tpu.memory_space<vmem>>, vector<1x1x128xf32>
    %49 = vector.shape_cast %48 : vector<1x1x128xf32> to vector<1x128xf32>
    %cst_42 = arith.constant dense<0.000000e+00> : vector<8x128xf32>
    %50 = tpu.matmul %36, %43, %cst_42 {dimension_numbers = #tpu.dot_dimension_numbers<[1], [0], [0], [1], [0, 0, 1, 1], [], []>} : vector<8x128xf32>, vector<128x128xf32>, vector<8x128xf32> -> vector<8x128xf32>
    %cst_43 = arith.constant dense<0.000000e+00> : vector<8x128xf32>
    %51 = tpu.matmul %41, %43, %cst_43 {dimension_numbers = #tpu.dot_dimension_numbers<[1], [0], [0], [1], [0, 0, 1, 1], [], []>} : vector<8x128xf32>, vector<128x128xf32>, vector<8x128xf32> -> vector<8x128xf32>
    %52 = vector.broadcast %45 : vector<1x128xf32> to vector<8x128xf32>
    %53 = arith.addf %50, %52 : vector<8x128xf32>
    %cst_44 = arith.constant 0.000000e+00 : f32
    %54 = vector.broadcast %cst_44 : f32 to vector<8x128xf32>
    %55 = arith.maximumf %53, %54 : vector<8x128xf32>
    %56 = vector.broadcast %45 : vector<1x128xf32> to vector<8x128xf32>
    %57 = arith.addf %51, %56 : vector<8x128xf32>
    %cst_45 = arith.constant 0.000000e+00 : f32
    %58 = vector.broadcast %cst_45 : f32 to vector<8x128xf32>
    %59 = arith.maximumf %57, %58 : vector<8x128xf32>
    %cst_46 = arith.constant dense<0.000000e+00> : vector<8x128xf32>
    %60 = tpu.matmul %55, %47, %cst_46 {dimension_numbers = #tpu.dot_dimension_numbers<[1], [0], [0], [1], [0, 0, 1, 1], [], []>} : vector<8x128xf32>, vector<128x128xf32>, vector<8x128xf32> -> vector<8x128xf32>
    %cst_47 = arith.constant dense<0.000000e+00> : vector<8x128xf32>
    %61 = tpu.matmul %59, %47, %cst_47 {dimension_numbers = #tpu.dot_dimension_numbers<[1], [0], [0], [1], [0, 0, 1, 1], [], []>} : vector<8x128xf32>, vector<128x128xf32>, vector<8x128xf32> -> vector<8x128xf32>
    %62 = vector.broadcast %49 : vector<1x128xf32> to vector<8x128xf32>
    %63 = arith.addf %60, %62 : vector<8x128xf32>
    %cst_48 = arith.constant 0.000000e+00 : f32
    %64 = vector.broadcast %cst_48 : f32 to vector<8x128xf32>
    %65 = arith.maximumf %63, %64 : vector<8x128xf32>
    %66 = arith.addf %65, %36 : vector<8x128xf32>
    %67 = vector.broadcast %49 : vector<1x128xf32> to vector<8x128xf32>
    %68 = arith.addf %61, %67 : vector<8x128xf32>
    %cst_49 = arith.constant 0.000000e+00 : f32
    %69 = vector.broadcast %cst_49 : f32 to vector<8x128xf32>
    %70 = arith.maximumf %68, %69 : vector<8x128xf32>
    %71 = arith.addf %70, %41 : vector<8x128xf32>
    %c2 = arith.constant 2 : index
    %c0_50 = arith.constant 0 : index
    %c0_51 = arith.constant 0 : index
    %72 = vector.load %arg4[%c2, %c0_50, %c0_51] : memref<3x128x128xf32, #tpu.memory_space<vmem>>, vector<1x128x128xf32>
    %73 = vector.shape_cast %72 : vector<1x128x128xf32> to vector<128x128xf32>
    %c2_52 = arith.constant 2 : index
    %c0_53 = arith.constant 0 : index
    %c0_54 = arith.constant 0 : index
    %74 = vector.load %arg5[%c2_52, %c0_53, %c0_54] : memref<3x1x128xf32, #tpu.memory_space<vmem>>, vector<1x1x128xf32>
    %75 = vector.shape_cast %74 : vector<1x1x128xf32> to vector<1x128xf32>
    %c2_55 = arith.constant 2 : index
    %c0_56 = arith.constant 0 : index
    %c0_57 = arith.constant 0 : index
    %76 = vector.load %arg6[%c2_55, %c0_56, %c0_57] : memref<3x128x128xf32, #tpu.memory_space<vmem>>, vector<1x128x128xf32>
    %77 = vector.shape_cast %76 : vector<1x128x128xf32> to vector<128x128xf32>
    %c2_58 = arith.constant 2 : index
    %c0_59 = arith.constant 0 : index
    %c0_60 = arith.constant 0 : index
    %78 = vector.load %arg7[%c2_58, %c0_59, %c0_60] : memref<3x1x128xf32, #tpu.memory_space<vmem>>, vector<1x1x128xf32>
    %79 = vector.shape_cast %78 : vector<1x1x128xf32> to vector<1x128xf32>
    %cst_61 = arith.constant dense<0.000000e+00> : vector<8x128xf32>
    %80 = tpu.matmul %66, %73, %cst_61 {dimension_numbers = #tpu.dot_dimension_numbers<[1], [0], [0], [1], [0, 0, 1, 1], [], []>} : vector<8x128xf32>, vector<128x128xf32>, vector<8x128xf32> -> vector<8x128xf32>
    %cst_62 = arith.constant dense<0.000000e+00> : vector<8x128xf32>
    %81 = tpu.matmul %71, %73, %cst_62 {dimension_numbers = #tpu.dot_dimension_numbers<[1], [0], [0], [1], [0, 0, 1, 1], [], []>} : vector<8x128xf32>, vector<128x128xf32>, vector<8x128xf32> -> vector<8x128xf32>
    %82 = vector.broadcast %75 : vector<1x128xf32> to vector<8x128xf32>
    %83 = arith.addf %80, %82 : vector<8x128xf32>
    %cst_63 = arith.constant 0.000000e+00 : f32
    %84 = vector.broadcast %cst_63 : f32 to vector<8x128xf32>
    %85 = arith.maximumf %83, %84 : vector<8x128xf32>
    %86 = vector.broadcast %75 : vector<1x128xf32> to vector<8x128xf32>
    %87 = arith.addf %81, %86 : vector<8x128xf32>
    %cst_64 = arith.constant 0.000000e+00 : f32
    %88 = vector.broadcast %cst_64 : f32 to vector<8x128xf32>
    %89 = arith.maximumf %87, %88 : vector<8x128xf32>
    %cst_65 = arith.constant dense<0.000000e+00> : vector<8x128xf32>
    %90 = tpu.matmul %85, %77, %cst_65 {dimension_numbers = #tpu.dot_dimension_numbers<[1], [0], [0], [1], [0, 0, 1, 1], [], []>} : vector<8x128xf32>, vector<128x128xf32>, vector<8x128xf32> -> vector<8x128xf32>
    %cst_66 = arith.constant dense<0.000000e+00> : vector<8x128xf32>
    %91 = tpu.matmul %89, %77, %cst_66 {dimension_numbers = #tpu.dot_dimension_numbers<[1], [0], [0], [1], [0, 0, 1, 1], [], []>} : vector<8x128xf32>, vector<128x128xf32>, vector<8x128xf32> -> vector<8x128xf32>
    %92 = vector.broadcast %79 : vector<1x128xf32> to vector<8x128xf32>
    %93 = arith.addf %90, %92 : vector<8x128xf32>
    %cst_67 = arith.constant 0.000000e+00 : f32
    %94 = vector.broadcast %cst_67 : f32 to vector<8x128xf32>
    %95 = arith.maximumf %93, %94 : vector<8x128xf32>
    %96 = arith.addf %95, %66 : vector<8x128xf32>
    %97 = vector.broadcast %79 : vector<1x128xf32> to vector<8x128xf32>
    %98 = arith.addf %91, %97 : vector<8x128xf32>
    %cst_68 = arith.constant 0.000000e+00 : f32
    %99 = vector.broadcast %cst_68 : f32 to vector<8x128xf32>
    %100 = arith.maximumf %98, %99 : vector<8x128xf32>
    %101 = arith.addf %100, %71 : vector<8x128xf32>
    %c0_69 = arith.constant 0 : index
    %c0_70 = arith.constant 0 : index
    %102 = vector.load %arg8[%c0_69, %c0_70] : memref<128x128xf32, #tpu.memory_space<vmem>>, vector<128x128xf32>
    %cst_71 = arith.constant dense<0.000000e+00> : vector<8x128xf32>
    %103 = tpu.matmul %96, %102, %cst_71 {dimension_numbers = #tpu.dot_dimension_numbers<[1], [0], [0], [1], [0, 0, 1, 1], [], []>} : vector<8x128xf32>, vector<128x128xf32>, vector<8x128xf32> -> vector<8x128xf32>
    %c0_72 = arith.constant 0 : index
    %c0_73 = arith.constant 0 : index
    %104 = vector.load %arg9[%c0_72, %c0_73] : memref<1x128xf32, #tpu.memory_space<vmem>>, vector<1x128xf32>
    %105 = vector.broadcast %104 : vector<1x128xf32> to vector<8x128xf32>
    %106 = arith.addf %103, %105 : vector<8x128xf32>
    %c0_74 = arith.constant 0 : index
    %c0_75 = arith.constant 0 : index
    %107 = vector.load %arg8[%c0_74, %c0_75] : memref<128x128xf32, #tpu.memory_space<vmem>>, vector<128x128xf32>
    %cst_76 = arith.constant dense<0.000000e+00> : vector<8x128xf32>
    %108 = tpu.matmul %101, %107, %cst_76 {dimension_numbers = #tpu.dot_dimension_numbers<[1], [0], [0], [1], [0, 0, 1, 1], [], []>} : vector<8x128xf32>, vector<128x128xf32>, vector<8x128xf32> -> vector<8x128xf32>
    %c0_77 = arith.constant 0 : index
    %c0_78 = arith.constant 0 : index
    %109 = vector.load %arg9[%c0_77, %c0_78] : memref<1x128xf32, #tpu.memory_space<vmem>>, vector<1x128xf32>
    %110 = vector.broadcast %109 : vector<1x128xf32> to vector<8x128xf32>
    %111 = arith.addf %108, %110 : vector<8x128xf32>
    %c0_79 = arith.constant 0 : index
    %c0_80 = arith.constant 0 : index
    %112 = vector.load %arg10[%c0_79, %c0_80] : memref<16x128xf32, #tpu.memory_space<vmem>>, vector<8x128xf32>
    tpu.vector_store %arg10[%c0_79, %c0_80], %106 {strides = array<i32>} : memref<16x128xf32, #tpu.memory_space<vmem>>, vector<8x128xf32>,
    %c8_81 = arith.constant 8 : index
    %c0_82 = arith.constant 0 : index
    %113 = vector.load %arg10[%c8_81, %c0_82] : memref<16x128xf32, #tpu.memory_space<vmem>>, vector<8x128xf32>
    tpu.vector_store %arg10[%c8_81, %c0_82], %111 {strides = array<i32>} : memref<16x128xf32, #tpu.memory_space<vmem>>, vector<8x128xf32>,
    return
  }
  func.func @transform_0(%arg0: i32) -> (i32, i32) {
    %c0_i32 = arith.constant 0 : i32
    %c0_i32_0 = arith.constant 0 : i32
    return %arg0, %c0_i32 : i32, i32
  }
  func.func @transform_1(%arg0: i32) -> (i32, i32) {
    %c0_i32 = arith.constant 0 : i32
    %c0_i32_0 = arith.constant 0 : i32
    %c0_i32_1 = arith.constant 0 : i32
    return %c0_i32, %c0_i32_0 : i32, i32
  }
  func.func @transform_2(%arg0: i32) -> (i32, i32) {
    %c0_i32 = arith.constant 0 : i32
    %c0_i32_0 = arith.constant 0 : i32
    %c0_i32_1 = arith.constant 0 : i32
    return %c0_i32, %c0_i32_0 : i32, i32
  }
  func.func @transform_3(%arg0: i32) -> (i32, i32, i32) {
    %c0_i32 = arith.constant 0 : i32
    %c0_i32_0 = arith.constant 0 : i32
    %c0_i32_1 = arith.constant 0 : i32
    %c0_i32_2 = arith.constant 0 : i32
    return %c0_i32, %c0_i32_0, %c0_i32_1 : i32, i32, i32
  }
  func.func @transform_4(%arg0: i32) -> (i32, i32, i32) {
    %c0_i32 = arith.constant 0 : i32
    %c0_i32_0 = arith.constant 0 : i32
    %c0_i32_1 = arith.constant 0 : i32
    %c0_i32_2 = arith.constant 0 : i32
    return %c0_i32, %c0_i32_0, %c0_i32_1 : i32, i32, i32
  }
  func.func @transform_5(%arg0: i32) -> (i32, i32, i32) {
    %c0_i32 = arith.constant 0 : i32
    %c0_i32_0 = arith.constant 0 : i32
    %c0_i32_1 = arith.constant 0 : i32
    %c0_i32_2 = arith.constant 0 : i32
    return %c0_i32, %c0_i32_0, %c0_i32_1 : i32, i32, i32
  }
  func.func @transform_6(%arg0: i32) -> (i32, i32, i32) {
    %c0_i32 = arith.constant 0 : i32
    %c0_i32_0 = arith.constant 0 : i32
    %c0_i32_1 = arith.constant 0 : i32
    %c0_i32_2 = arith.constant 0 : i32
    return %c0_i32, %c0_i32_0, %c0_i32_1 : i32, i32, i32
  }
  func.func @transform_7(%arg0: i32) -> (i32, i32) {
    %c0_i32 = arith.constant 0 : i32
    %c0_i32_0 = arith.constant 0 : i32
    %c0_i32_1 = arith.constant 0 : i32
    return %c0_i32, %c0_i32_0 : i32, i32
  }
  func.func @transform_8(%arg0: i32) -> (i32, i32) {
    %c0_i32 = arith.constant 0 : i32
    %c0_i32_0 = arith.constant 0 : i32
    %c0_i32_1 = arith.constant 0 : i32
    return %c0_i32, %c0_i32_0 : i32, i32
  }
  func.func @transform_9(%arg0: i32) -> (i32, i32) {
    %c0_i32 = arith.constant 0 : i32
    %c0_i32_0 = arith.constant 0 : i32
    return %arg0, %c0_i32 : i32, i32
  }
}

</mosaic_0001>

<llo_original>
// kernel: tpu_custom_call.1
$region0: #{tpu_custom_call.1}
  #allocation0 [shape = 'u32[]', space=smem, size = 0x4, offset = 0x4, fixed_abs, tag = 'smem constant byte address 0x4 - core index']
  #allocation1 [shape = 'u32[144,128]{1,0:T(1,128)}', space=vmem, size = 0x12000, scoped, tag = 'internal scratch']
  %s0 = inlined_call_operand.hbm [shape: f32[16,128], index: 0, kind: input, shape index: {}]
  %s1 = inlined_call_operand.hbm [shape: f32[128,128], index: 1, kind: input, shape index: {}]
  %s2 = inlined_call_operand.vmem [shape: f32[1,128], index: 2, kind: input, shape index: {}]
  %s3 = inlined_call_operand.hbm [shape: f32[3,128,128], index: 3, kind: input, shape index: {}]
  %s4 = inlined_call_operand.vmem [shape: f32[3,1,128], index: 4, kind: input, shape index: {}]
  %s5 = inlined_call_operand.hbm [shape: f32[3,128,128], index: 5, kind: input, shape index: {}]
  %s6 = inlined_call_operand.vmem [shape: f32[3,1,128], index: 6, kind: input, shape index: {}]
  %s7 = inlined_call_operand.hbm [shape: f32[128,128], index: 7, kind: input, shape index: {}]
  %s8 = inlined_call_operand.vmem [shape: f32[1,128], index: 8, kind: input, shape index: {}]
  %s9 = inlined_call_operand.hbm [shape: f32[16,128], index: 9, kind: output, shape index: {}]
  %s10 = sld [smem:[#allocation0]]
  $region66: #{tpu_custom_call.1} parent=0
    _
  %s12 = ssub.s32 1, %s10
  %s13 = scalar_select 0, %s12, %s10
  $region1: #{tpu_custom_call.1} parent=0
    #allocation2 [shape = 'u8[8192]{0}', space=vmem, size = 0x2000, scoped, tag = 'input window, operand 0, single buffered']
    #allocation3 [shape = 's32[1]{0}', space=sflag, size = 0x4, scoped, tag = 'scoped memory for tpu_custom_call.1']
    #allocation4 [shape = 's32[1]{0}', space=sflag, size = 0x4, scoped, tag = 'scoped memory for tpu_custom_call.1']
    #allocation5 [shape = 'u8[65536]{0}', space=vmem, size = 0x10000, scoped, tag = 'input window, operand 1, single buffered']
    #allocation6 [shape = 's32[1]{0}', space=sflag, size = 0x4, scoped, tag = 'scoped memory for tpu_custom_call.1']
    #allocation7 [shape = 'u8[196608]{0}', space=vmem, size = 0x30000, scoped, tag = 'input window, operand 3, single buffered']
    #allocation8 [shape = 'u8[196608]{0}', space=vmem, size = 0x30000, scoped, tag = 'input window, operand 5, single buffered']
    #allocation9 [shape = 's32[1]{0}', space=sflag, size = 0x4, scoped, tag = 'scoped memory for tpu_custom_call.1']
    #allocation10 [shape = 'u8[65536]{0}', space=vmem, size = 0x10000, scoped, tag = 'input window, operand 7, single buffered']
    #allocation11 [shape = 'u8[8192]{0}', space=vmem, size = 0x2000, scoped, tag = 'output window, operand 0, single buffered']
    %14 = vsyncpa [#allocation3], 0
    %15 = vsyncpa [#allocation6], 0
    %16 = vsyncpa [#allocation9], 0
    %17 = vsyncpa [#allocation4], 0
    // Predicated region
    $region2: #{tpu_custom_call.1} parent=1 // pred_check
      _
    $region3: #{tpu_custom_call.1} parent=1 // pred_check_branch
      %19 = sbr.rel (0) target = $region5
    $region4: #{tpu_custom_call.1} parent=1 // pred_region
      %s21 = ssub.s32 256, 256
      %22 = vsyncadd [#allocation3], %s21
      %s23 = sshll.u32 [#allocation2], 4
      %s24 = int_to_ptr.vmem [resolvable:$true] %s23
      %29 = dma.hbm_to_vmem [thread:$0]  %s0, 256, %s24, [#allocation3], 128, 128, 8
    $region5: #{tpu_custom_call.1} parent=1 // pred_fallthru
      _
    // Predicated region
    $region6: #{tpu_custom_call.1} parent=1 // pred_check
      _
    $region7: #{tpu_custom_call.1} parent=1 // pred_check_branch
      %31 = sbr.rel (0) target = $region9
    $region8: #{tpu_custom_call.1} parent=1 // pred_region
      %s33 = ssub.s32 2048, 2048
      %34 = vsyncadd [#allocation6], %s33
      %s35 = sshll.u32 [#allocation5], 4
      %s36 = int_to_ptr.vmem [resolvable:$true] %s35
      %41 = dma.hbm_to_vmem [thread:$0]  %s1, 2048, %s36, [#allocation6], 128, 128, 8
    $region9: #{tpu_custom_call.1} parent=1 // pred_fallthru
      _
    // Predicated region
    $region10: #{tpu_custom_call.1} parent=1 // pred_check
      _
    $region11: #{tpu_custom_call.1} parent=1 // pred_check_branch
      %43 = sbr.rel (0) target = $region13
    $region12: #{tpu_custom_call.1} parent=1 // pred_region
      _
    $region13: #{tpu_custom_call.1} parent=1 // pred_fallthru
      _
    // Predicated region
    $region14: #{tpu_custom_call.1} parent=1 // pred_check
      _
    $region15: #{tpu_custom_call.1} parent=1 // pred_check_branch
      %45 = sbr.rel (0) target = $region17
    $region16: #{tpu_custom_call.1} parent=1 // pred_region
      %s47 = ssub.s32 6144, 6144
      %48 = vsyncadd [#allocation6], %s47
      %s49 = sshll.u32 [#allocation7], 4
      %s50 = int_to_ptr.vmem [resolvable:$true] %s49
      %55 = dma.hbm_to_vmem [thread:$0]  %s3, 6144, %s50, [#allocation6], 128, 128, 8
    $region17: #{tpu_custom_call.1} parent=1 // pred_fallthru
      _
    // Predicated region
    $region18: #{tpu_custom_call.1} parent=1 // pred_check
      _
    $region19: #{tpu_custom_call.1} parent=1 // pred_check_branch
      %57 = sbr.rel (0) target = $region21
    $region20: #{tpu_custom_call.1} parent=1 // pred_region
      _
    $region21: #{tpu_custom_call.1} parent=1 // pred_fallthru
      _
    // Predicated region
    $region22: #{tpu_custom_call.1} parent=1 // pred_check
      _
    $region23: #{tpu_custom_call.1} parent=1 // pred_check_branch
      %59 = sbr.rel (0) target = $region25
    $region24: #{tpu_custom_call.1} parent=1 // pred_region
      %s61 = ssub.s32 6144, 6144
      %62 = vsyncadd [#allocation9], %s61
      %s63 = sshll.u32 [#allocation8], 4
      %s64 = int_to_ptr.vmem [resolvable:$true] %s63
      %69 = dma.hbm_to_vmem [thread:$0]  %s5, 6144, %s64, [#allocation9], 128, 128, 8
    $region25: #{tpu_custom_call.1} parent=1 // pred_fallthru
      _
    // Predicated region
    $region26: #{tpu_custom_call.1} parent=1 // pred_check
      _
    $region27: #{tpu_custom_call.1} parent=1 // pred_check_branch
      %71 = sbr.rel (0) target = $region29
    $region28: #{tpu_custom_call.1} parent=1 // pred_region
      _
    $region29: #{tpu_custom_call.1} parent=1 // pred_fallthru
      _
    // Predicated region
    $region30: #{tpu_custom_call.1} parent=1 // pred_check
      _
    $region31: #{tpu_custom_call.1} parent=1 // pred_check_branch
      %73 = sbr.rel (0) target = $region33
    $region32: #{tpu_custom_call.1} parent=1 // pred_region
      %s75 = ssub.s32 2048, 2048
      %76 = vsyncadd [#allocation9], %s75
      %s77 = sshll.u32 [#allocation10], 4
      %s78 = int_to_ptr.vmem [resolvable:$true] %s77
      %83 = dma.hbm_to_vmem [thread:$0]  %s7, 2048, %s78, [#allocation9], 128, 128, 8
    $region33: #{tpu_custom_call.1} parent=1 // pred_fallthru
      _
    // Predicated region
    $region34: #{tpu_custom_call.1} parent=1 // pred_check
      _
    $region35: #{tpu_custom_call.1} parent=1 // pred_check_branch
      %85 = sbr.rel (0) target = $region37
    $region36: #{tpu_custom_call.1} parent=1 // pred_region
      _
    $region37: #{tpu_custom_call.1} parent=1 // pred_fallthru
      _
    // Predicated region
    $region38: #{tpu_custom_call.1} parent=1 // pred_check
      _
    $region39: #{tpu_custom_call.1} parent=1 // pred_check_branch
      %87 = sbr.rel (0) target = $region41
    $region40: #{tpu_custom_call.1} parent=1 // pred_region
      %88 = dma.done [#allocation3], 256
    $region41: #{tpu_custom_call.1} parent=1 // pred_fallthru
      _
    // Predicated region
    $region42: #{tpu_custom_call.1} parent=1 // pred_check
      _
    $region43: #{tpu_custom_call.1} parent=1 // pred_check_branch
      %90 = sbr.rel (0) target = $region45
    $region44: #{tpu_custom_call.1} parent=1 // pred_region
      %91 = dma.done [#allocation6], 2048
    $region45: #{tpu_custom_call.1} parent=1 // pred_fallthru
      _
    // Predicated region
    $region46: #{tpu_custom_call.1} parent=1 // pred_check
      _
    $region47: #{tpu_custom_call.1} parent=1 // pred_check_branch
      %93 = sbr.rel (0) target = $region49
    $region48: #{tpu_custom_call.1} parent=1 // pred_region
      %94 = dma.done [#allocation6], 6144
    $region49: #{tpu_custom_call.1} parent=1 // pred_fallthru
      _
    // Predicated region
    $region50: #{tpu_custom_call.1} parent=1 // pred_check
      _
    $region51: #{tpu_custom_call.1} parent=1 // pred_check_branch
      %96 = sbr.rel (0) target = $region53
    $region52: #{tpu_custom_call.1} parent=1 // pred_region
      %97 = dma.done [#allocation9], 6144
    $region53: #{tpu_custom_call.1} parent=1 // pred_fallthru
      _
    // Predicated region
    $region54: #{tpu_custom_call.1} parent=1 // pred_check
      _
    $region55: #{tpu_custom_call.1} parent=1 // pred_check_branch
      %99 = sbr.rel (0) target = $region57
    $region56: #{tpu_custom_call.1} parent=1 // pred_region
      %100 = dma.done [#allocation9], 2048
    $region57: #{tpu_custom_call.1} parent=1 // pred_fallthru
      _
    %v101 = vld [vmem:[#allocation2] sm:$0xff]
    %v102 = vld [vmem:[#allocation2 + $0x8] sm:$0xff]
    %v103 = vld [vmem:[#allocation5] sm:$0xff]
    %v104 = vld [vmem:[#allocation5 + $0x8] sm:$0xff]
    %v105 = vld [vmem:[#allocation5 + $0x10] sm:$0xff]
    %v106 = vld [vmem:[#allocation5 + $0x18] sm:$0xff]
    %v107 = vld [vmem:[#allocation5 + $0x20] sm:$0xff]
    %v108 = vld [vmem:[#allocation5 + $0x28] sm:$0xff]
    %v109 = vld [vmem:[#allocation5 + $0x30] sm:$0xff]
    %v110 = vld [vmem:[#allocation5 + $0x38] sm:$0xff]
    %v111 = vld [vmem:[#allocation5 + $0x40] sm:$0xff]
    %v112 = vld [vmem:[#allocation5 + $0x48] sm:$0xff]
    %v113 = vld [vmem:[#allocation5 + $0x50] sm:$0xff]
    %v114 = vld [vmem:[#allocation5 + $0x58] sm:$0xff]
    %v115 = vld [vmem:[#allocation5 + $0x60] sm:$0xff]
    %v116 = vld [vmem:[#allocation5 + $0x68] sm:$0xff]
    %v117 = vld [vmem:[#allocation5 + $0x70] sm:$0xff]
    %v118 = vld [vmem:[#allocation5 + $0x78] sm:$0xff]
    %v119 = vld [vmem:[%s2] sm:$0x1]
    %v121 = vlaneseq
    %v122 = vshrl.u32 %v121, 7
    %v123 = vsub.s32 0, %v122
    %v124 = vrot.slane %v119, %v123
    %126 = vmatprep.subr.mxu0 0.0
    %127 = vmatpush1.msra.mxu0 %v118
    %128 = vmatprep.subr.mxu0 0.0
    %129 = vmatpush1.msra.mxu0 %v117
    %130 = vmatprep.subr.mxu0 0.0
    %131 = vmatpush1.msra.mxu0 %v116
    %132 = vmatprep.subr.mxu0 0.0
    %133 = vmatpush1.msra.mxu0 %v115
    %134 = vmatprep.subr.mxu0 0.0
    %135 = vmatpush1.msra.mxu0 %v114
    %136 = vmatprep.subr.mxu0 0.0
    %137 = vmatpush1.msra.mxu0 %v113
    %138 = vmatprep.subr.mxu0 0.0
    %139 = vmatpush1.msra.mxu0 %v112
    %140 = vmatprep.subr.mxu0 0.0
    %141 = vmatpush1.msra.mxu0 %v111
    %142 = vmatprep.subr.mxu0 0.0
    %143 = vmatpush1.msra.mxu0 %v110
    %144 = vmatprep.subr.mxu0 0.0
    %145 = vmatpush1.msra.mxu0 %v109
    %146 = vmatprep.subr.mxu0 0.0
    %147 = vmatpush1.msra.mxu0 %v108
    %148 = vmatprep.subr.mxu0 0.0
    %149 = vmatpush1.msra.mxu0 %v107
    %150 = vmatprep.subr.mxu0 0.0
    %151 = vmatpush1.msra.mxu0 %v106
    %152 = vmatprep.subr.mxu0 0.0
    %153 = vmatpush1.msra.mxu0 %v105
    %154 = vmatprep.subr.mxu0 0.0
    %155 = vmatpush1.msra.mxu0 %v104
    %156 = vmatprep.subr.mxu0 0.0
    %157 = vmatpush1.msra.mxu0 %v103
    %158 = vmatprep.subr.mxu0 0.0
    %159 = vmatpush2.msra.mxu0 0.0
    %160 = vmatprep.subr.mxu0 0.0
    %161 = vmatpush2.msra.mxu0 0.0
    %162 = vmatprep.subr.mxu0 0.0
    %163 = vmatpush2.msra.mxu0 0.0
    %164 = vmatprep.subr.mxu0 0.0
    %165 = vmatpush2.msra.mxu0 0.0
    %166 = vmatprep.subr.mxu0 0.0
    %167 = vmatpush2.msra.mxu0 0.0
    %168 = vmatprep.subr.mxu0 0.0
    %169 = vmatpush2.msra.mxu0 0.0
    %170 = vmatprep.subr.mxu0 0.0
    %171 = vmatpush2.msra.mxu0 0.0
    %172 = vmatprep.subr.mxu0 0.0
    %173 = vmatpush2.msra.mxu0 0.0
    %174 = vmatprep.subr.mxu0 0.0
    %175 = vmatpush2.msra.mxu0 0.0
    %176 = vmatprep.subr.mxu0 0.0
    %177 = vmatpush2.msra.mxu0 0.0
    %178 = vmatprep.subr.mxu0 0.0
    %179 = vmatpush2.msra.mxu0 0.0
    %180 = vmatprep.subr.mxu0 0.0
    %181 = vmatpush2.msra.mxu0 0.0
    %182 = vmatprep.subr.mxu0 0.0
    %183 = vmatpush2.msra.mxu0 0.0
    %184 = vmatprep.subr.mxu0 0.0
    %185 = vmatpush2.msra.mxu0 0.0
    %186 = vmatprep.subr.mxu0 0.0
    %187 = vmatpush2.msra.mxu0 0.0
    %188 = vmatprep.subr.mxu0 0.0
    %189 = vmatpush2.msra.mxu0 0.0
    %190 = vmatprep.mubr.f32.mxu0 0.0
    %191 = vmatmul.mubr.f32.gmra.mxu0 %v101
    %v192 = vpop.f32.mrf.mxu0
    %v193 = vadd.f32 %v124, %v192
    %v194 = vpop.f32.mrf.mxu0
    %195 = vdwg.mxu0
    %196 = vmatprep.subr.mxu0 0.0
    %197 = vmatpush1.msra.mxu0 %v118
    %198 = vmatprep.subr.mxu0 0.0
    %199 = vmatpush1.msra.mxu0 %v117
    %200 = vmatprep.subr.mxu0 0.0
    %201 = vmatpush1.msra.mxu0 %v116
    %202 = vmatprep.subr.mxu0 0.0
    %203 = vmatpush1.msra.mxu0 %v115
    %204 = vmatprep.subr.mxu0 0.0
    %205 = vmatpush1.msra.mxu0 %v114
    %206 = vmatprep.subr.mxu0 0.0
    %207 = vmatpush1.msra.mxu0 %v113
    %208 = vmatprep.subr.mxu0 0.0
    %209 = vmatpush1.msra.mxu0 %v112
    %210 = vmatprep.subr.mxu0 0.0
    %211 = vmatpush1.msra.mxu0 %v111
    %212 = vmatprep.subr.mxu0 0.0
    %213 = vmatpush1.msra.mxu0 %v110
    %214 = vmatprep.subr.mxu0 0.0
    %215 = vmatpush1.msra.mxu0 %v109
    %216 = vmatprep.subr.mxu0 0.0
    %217 = vmatpush1.msra.mxu0 %v108
    %218 = vmatprep.subr.mxu0 0.0
    %219 = vmatpush1.msra.mxu0 %v107
    %220 = vmatprep.subr.mxu0 0.0
    %221 = vmatpush1.msra.mxu0 %v106
    %222 = vmatprep.subr.mxu0 0.0
    %223 = vmatpush1.msra.mxu0 %v105
    %224 = vmatprep.subr.mxu0 0.0
    %225 = vmatpush1.msra.mxu0 %v104
    %226 = vmatprep.subr.mxu0 0.0
    %227 = vmatpush1.msra.mxu0 %v103
    %228 = vmatprep.subr.mxu0 0.0
    %229 = vmatpush2.msra.mxu0 0.0
    %230 = vmatprep.subr.mxu0 0.0
    %231 = vmatpush2.msra.mxu0 0.0
    %232 = vmatprep.subr.mxu0 0.0
    %233 = vmatpush2.msra.mxu0 0.0
    %234 = vmatprep.subr.mxu0 0.0
    %235 = vmatpush2.msra.mxu0 0.0
    %236 = vmatprep.subr.mxu0 0.0
    %237 = vmatpush2.msra.mxu0 0.0
    %238 = vmatprep.subr.mxu0 0.0
    %239 = vmatpush2.msra.mxu0 0.0
    %240 = vmatprep.subr.mxu0 0.0
    %241 = vmatpush2.msra.mxu0 0.0
    %242 = vmatprep.subr.mxu0 0.0
    %243 = vmatpush2.msra.mxu0 0.0
    %244 = vmatprep.subr.mxu0 0.0
    %245 = vmatpush2.msra.mxu0 0.0
    %246 = vmatprep.subr.mxu0 0.0
    %247 = vmatpush2.msra.mxu0 0.0
    %248 = vmatprep.subr.mxu0 0.0
    %249 = vmatpush2.msra.mxu0 0.0
    %250 = vmatprep.subr.mxu0 0.0
    %251 = vmatpush2.msra.mxu0 0.0
    %252 = vmatprep.subr.mxu0 0.0
    %253 = vmatpush2.msra.mxu0 0.0
    %254 = vmatprep.subr.mxu0 0.0
    %255 = vmatpush2.msra.mxu0 0.0
    %256 = vmatprep.subr.mxu0 0.0
    %257 = vmatpush2.msra.mxu0 0.0
    %258 = vmatprep.subr.mxu0 0.0
    %259 = vmatpush2.msra.mxu0 0.0
    %260 = vmatprep.mubr.f32.mxu0 0.0
    %261 = vmatmul.mubr.f32.gmra.mxu0 %v102
    %v262 = vpop.f32.mrf.mxu0
    %v263 = vadd.f32 %v124, %v262
    %v264 = vpop.f32.mrf.mxu0
    %265 = vdwg.mxu0
    %v266 = vld [vmem:[#allocation7] sm:$0xff]
    %v267 = vld [vmem:[#allocation7 + $0x8] sm:$0xff]
    %v268 = vld [vmem:[#allocation7 + $0x10] sm:$0xff]
    %v269 = vld [vmem:[#allocation7 + $0x18] sm:$0xff]
    %v270 = vld [vmem:[#allocation7 + $0x20] sm:$0xff]
    %v271 = vld [vmem:[#allocation7 + $0x28] sm:$0xff]
    %v272 = vld [vmem:[#allocation7 + $0x30] sm:$0xff]
    %v273 = vld [vmem:[#allocation7 + $0x38] sm:$0xff]
    %v274 = vld [vmem:[#allocation7 + $0x40] sm:$0xff]
    %v275 = vld [vmem:[#allocation7 + $0x48] sm:$0xff]
    %v276 = vld [vmem:[#allocation7 + $0x50] sm:$0xff]
    %v277 = vld [vmem:[#allocation7 + $0x58] sm:$0xff]
    %v278 = vld [vmem:[#allocation7 + $0x60] sm:$0xff]
    %v279 = vld [vmem:[#allocation7 + $0x68] sm:$0xff]
    %v280 = vld [vmem:[#allocation7 + $0x70] sm:$0xff]
    %v281 = vld [vmem:[#allocation7 + $0x78] sm:$0xff]
    %v282 = vld [vmem:[%s4] sm:$0x1]
    %v283 = vld [vmem:[#allocation8] sm:$0xff]
    %v284 = vld [vmem:[#allocation8 + $0x8] sm:$0xff]
    %v285 = vld [vmem:[#allocation8 + $0x10] sm:$0xff]
    %v286 = vld [vmem:[#allocation8 + $0x18] sm:$0xff]
    %v287 = vld [vmem:[#allocation8 + $0x20] sm:$0xff]
    %v288 = vld [vmem:[#allocation8 + $0x28] sm:$0xff]
    %v289 = vld [vmem:[#allocation8 + $0x30] sm:$0xff]
    %v290 = vld [vmem:[#allocation8 + $0x38] sm:$0xff]
    %v291 = vld [vmem:[#allocation8 + $0x40] sm:$0xff]
    %v292 = vld [vmem:[#allocation8 + $0x48] sm:$0xff]
    %v293 = vld [vmem:[#allocation8 + $0x50] sm:$0xff]
    %v294 = vld [vmem:[#allocation8 + $0x58] sm:$0xff]
    %v295 = vld [vmem:[#allocation8 + $0x60] sm:$0xff]
    %v296 = vld [vmem:[#allocation8 + $0x68] sm:$0xff]
    %v297 = vld [vmem:[#allocation8 + $0x70] sm:$0xff]
    %v298 = vld [vmem:[#allocation8 + $0x78] sm:$0xff]
    %v299 = vld [vmem:[%s6] sm:$0x1]
    %v301 = vlaneseq
    %v302 = vshrl.u32 %v301, 7
    %v303 = vsub.s32 0, %v302
    %v304 = vrot.slane %v282, %v303
    %306 = vmatprep.subr.mxu0 0.0
    %307 = vmatpush1.msra.mxu0 %v281
    %308 = vmatprep.subr.mxu0 0.0
    %309 = vmatpush1.msra.mxu0 %v280
    %310 = vmatprep.subr.mxu0 0.0
    %311 = vmatpush1.msra.mxu0 %v279
    %312 = vmatprep.subr.mxu0 0.0
    %313 = vmatpush1.msra.mxu0 %v278
    %314 = vmatprep.subr.mxu0 0.0
    %315 = vmatpush1.msra.mxu0 %v277
    %316 = vmatprep.subr.mxu0 0.0
    %317 = vmatpush1.msra.mxu0 %v276
    %318 = vmatprep.subr.mxu0 0.0
    %319 = vmatpush1.msra.mxu0 %v275
    %320 = vmatprep.subr.mxu0 0.0
    %321 = vmatpush1.msra.mxu0 %v274
    %322 = vmatprep.subr.mxu0 0.0
    %323 = vmatpush1.msra.mxu0 %v273
    %324 = vmatprep.subr.mxu0 0.0
    %325 = vmatpush1.msra.mxu0 %v272
    %326 = vmatprep.subr.mxu0 0.0
    %327 = vmatpush1.msra.mxu0 %v271
    %328 = vmatprep.subr.mxu0 0.0
    %329 = vmatpush1.msra.mxu0 %v270
    %330 = vmatprep.subr.mxu0 0.0
    %331 = vmatpush1.msra.mxu0 %v269
    %332 = vmatprep.subr.mxu0 0.0
    %333 = vmatpush1.msra.mxu0 %v268
    %334 = vmatprep.subr.mxu0 0.0
    %335 = vmatpush1.msra.mxu0 %v267
    %336 = vmatprep.subr.mxu0 0.0
    %337 = vmatpush1.msra.mxu0 %v266
    %338 = vmatprep.subr.mxu0 0.0
    %339 = vmatpush2.msra.mxu0 0.0
    %340 = vmatprep.subr.mxu0 0.0
    %341 = vmatpush2.msra.mxu0 0.0
    %342 = vmatprep.subr.mxu0 0.0
    %343 = vmatpush2.msra.mxu0 0.0
    %344 = vmatprep.subr.mxu0 0.0
    %345 = vmatpush2.msra.mxu0 0.0
    %346 = vmatprep.subr.mxu0 0.0
    %347 = vmatpush2.msra.mxu0 0.0
    %348 = vmatprep.subr.mxu0 0.0
    %349 = vmatpush2.msra.mxu0 0.0
    %350 = vmatprep.subr.mxu0 0.0
    %351 = vmatpush2.msra.mxu0 0.0
    %352 = vmatprep.subr.mxu0 0.0
    %353 = vmatpush2.msra.mxu0 0.0
    %354 = vmatprep.subr.mxu0 0.0
    %355 = vmatpush2.msra.mxu0 0.0
    %356 = vmatprep.subr.mxu0 0.0
    %357 = vmatpush2.msra.mxu0 0.0
    %358 = vmatprep.subr.mxu0 0.0
    %359 = vmatpush2.msra.mxu0 0.0
    %360 = vmatprep.subr.mxu0 0.0
    %361 = vmatpush2.msra.mxu0 0.0
    %362 = vmatprep.subr.mxu0 0.0
    %363 = vmatpush2.msra.mxu0 0.0
    %364 = vmatprep.subr.mxu0 0.0
    %365 = vmatpush2.msra.mxu0 0.0
    %366 = vmatprep.subr.mxu0 0.0
    %367 = vmatpush2.msra.mxu0 0.0
    %368 = vmatprep.subr.mxu0 0.0
    %369 = vmatpush2.msra.mxu0 0.0
    %370 = vmatprep.mubr.f32.mxu0 0.0
    %371 = vmatmul.mubr.f32.gmra.mxu0 %v193
    %v372 = vpop.f32.mrf.mxu0
    %v373 = vadd.f32 %v304, %v372
    %v374 = vpop.f32.mrf.mxu0
    %375 = vdwg.mxu0
    %v376 = vmax.f32 %v373, 0.0
    %377 = vmatprep.subr.mxu0 0.0
    %378 = vmatpush1.msra.mxu0 %v281
    %379 = vmatprep.subr.mxu0 0.0
    %380 = vmatpush1.msra.mxu0 %v280
    %381 = vmatprep.subr.mxu0 0.0
    %382 = vmatpush1.msra.mxu0 %v279
    %383 = vmatprep.subr.mxu0 0.0
    %384 = vmatpush1.msra.mxu0 %v278
    %385 = vmatprep.subr.mxu0 0.0
    %386 = vmatpush1.msra.mxu0 %v277
    %387 = vmatprep.subr.mxu0 0.0
    %388 = vmatpush1.msra.mxu0 %v276
    %389 = vmatprep.subr.mxu0 0.0
    %390 = vmatpush1.msra.mxu0 %v275
    %391 = vmatprep.subr.mxu0 0.0
    %392 = vmatpush1.msra.mxu0 %v274
    %393 = vmatprep.subr.mxu0 0.0
    %394 = vmatpush1.msra.mxu0 %v273
    %395 = vmatprep.subr.mxu0 0.0
    %396 = vmatpush1.msra.mxu0 %v272
    %397 = vmatprep.subr.mxu0 0.0
    %398 = vmatpush1.msra.mxu0 %v271
    %399 = vmatprep.subr.mxu0 0.0
    %400 = vmatpush1.msra.mxu0 %v270
    %401 = vmatprep.subr.mxu0 0.0
    %402 = vmatpush1.msra.mxu0 %v269
    %403 = vmatprep.subr.mxu0 0.0
    %404 = vmatpush1.msra.mxu0 %v268
    %405 = vmatprep.subr.mxu0 0.0
    %406 = vmatpush1.msra.mxu0 %v267
    %407 = vmatprep.subr.mxu0 0.0
    %408 = vmatpush1.msra.mxu0 %v266
    %409 = vmatprep.subr.mxu0 0.0
    %410 = vmatpush2.msra.mxu0 0.0
    %411 = vmatprep.subr.mxu0 0.0
    %412 = vmatpush2.msra.mxu0 0.0
    %413 = vmatprep.subr.mxu0 0.0
    %414 = vmatpush2.msra.mxu0 0.0
    %415 = vmatprep.subr.mxu0 0.0
    %416 = vmatpush2.msra.mxu0 0.0
    %417 = vmatprep.subr.mxu0 0.0
    %418 = vmatpush2.msra.mxu0 0.0
    %419 = vmatprep.subr.mxu0 0.0
    %420 = vmatpush2.msra.mxu0 0.0
    %421 = vmatprep.subr.mxu0 0.0
    %422 = vmatpush2.msra.mxu0 0.0
    %423 = vmatprep.subr.mxu0 0.0
    %424 = vmatpush2.msra.mxu0 0.0
    %425 = vmatprep.subr.mxu0 0.0
    %426 = vmatpush2.msra.mxu0 0.0
    %427 = vmatprep.subr.mxu0 0.0
    %428 = vmatpush2.msra.mxu0 0.0
    %429 = vmatprep.subr.mxu0 0.0
    %430 = vmatpush2.msra.mxu0 0.0
    %431 = vmatprep.subr.mxu0 0.0
    %432 = vmatpush2.msra.mxu0 0.0
    %433 = vmatprep.subr.mxu0 0.0
    %434 = vmatpush2.msra.mxu0 0.0
    %435 = vmatprep.subr.mxu0 0.0
    %436 = vmatpush2.msra.mxu0 0.0
    %437 = vmatprep.subr.mxu0 0.0
    %438 = vmatpush2.msra.mxu0 0.0
    %439 = vmatprep.subr.mxu0 0.0
    %440 = vmatpush2.msra.mxu0 0.0
    %441 = vmatprep.mubr.f32.mxu0 0.0
    %442 = vmatmul.mubr.f32.gmra.mxu0 %v263
    %v443 = vpop.f32.mrf.mxu0
    %v444 = vadd.f32 %v304, %v443
    %v445 = vpop.f32.mrf.mxu0
    %446 = vdwg.mxu0
    %v447 = vmax.f32 %v444, 0.0
    %v449 = vlaneseq
    %v450 = vshrl.u32 %v449, 7
    %v451 = vsub.s32 0, %v450
    %v452 = vrot.slane %v299, %v451
    %454 = vmatprep.subr.mxu0 0.0
    %455 = vmatpush1.msra.mxu0 %v298
    %456 = vmatprep.subr.mxu0 0.0
    %457 = vmatpush1.msra.mxu0 %v297
    %458 = vmatprep.subr.mxu0 0.0
    %459 = vmatpush1.msra.mxu0 %v296
    %460 = vmatprep.subr.mxu0 0.0
    %461 = vmatpush1.msra.mxu0 %v295
    %462 = vmatprep.subr.mxu0 0.0
    %463 = vmatpush1.msra.mxu0 %v294
    %464 = vmatprep.subr.mxu0 0.0
    %465 = vmatpush1.msra.mxu0 %v293
    %466 = vmatprep.subr.mxu0 0.0
    %467 = vmatpush1.msra.mxu0 %v292
    %468 = vmatprep.subr.mxu0 0.0
    %469 = vmatpush1.msra.mxu0 %v291
    %470 = vmatprep.subr.mxu0 0.0
    %471 = vmatpush1.msra.mxu0 %v290
    %472 = vmatprep.subr.mxu0 0.0
    %473 = vmatpush1.msra.mxu0 %v289
    %474 = vmatprep.subr.mxu0 0.0
    %475 = vmatpush1.msra.mxu0 %v288
    %476 = vmatprep.subr.mxu0 0.0
    %477 = vmatpush1.msra.mxu0 %v287
    %478 = vmatprep.subr.mxu0 0.0
    %479 = vmatpush1.msra.mxu0 %v286
    %480 = vmatprep.subr.mxu0 0.0
    %481 = vmatpush1.msra.mxu0 %v285
    %482 = vmatprep.subr.mxu0 0.0
    %483 = vmatpush1.msra.mxu0 %v284
    %484 = vmatprep.subr.mxu0 0.0
    %485 = vmatpush1.msra.mxu0 %v283
    %486 = vmatprep.subr.mxu0 0.0
    %487 = vmatpush2.msra.mxu0 0.0
    %488 = vmatprep.subr.mxu0 0.0
    %489 = vmatpush2.msra.mxu0 0.0
    %490 = vmatprep.subr.mxu0 0.0
    %491 = vmatpush2.msra.mxu0 0.0
    %492 = vmatprep.subr.mxu0 0.0
    %493 = vmatpush2.msra.mxu0 0.0
    %494 = vmatprep.subr.mxu0 0.0
    %495 = vmatpush2.msra.mxu0 0.0
    %496 = vmatprep.subr.mxu0 0.0
    %497 = vmatpush2.msra.mxu0 0.0
    %498 = vmatprep.subr.mxu0 0.0
    %499 = vmatpush2.msra.mxu0 0.0
    %500 = vmatprep.subr.mxu0 0.0
    %501 = vmatpush2.msra.mxu0 0.0
    %502 = vmatprep.subr.mxu0 0.0
    %503 = vmatpush2.msra.mxu0 0.0
    %504 = vmatprep.subr.mxu0 0.0
    %505 = vmatpush2.msra.mxu0 0.0
    %506 = vmatprep.subr.mxu0 0.0
    %507 = vmatpush2.msra.mxu0 0.0
    %508 = vmatprep.subr.mxu0 0.0
    %509 = vmatpush2.msra.mxu0 0.0
    %510 = vmatprep.subr.mxu0 0.0
    %511 = vmatpush2.msra.mxu0 0.0
    %512 = vmatprep.subr.mxu0 0.0
    %513 = vmatpush2.msra.mxu0 0.0
    %514 = vmatprep.subr.mxu0 0.0
    %515 = vmatpush2.msra.mxu0 0.0
    %516 = vmatprep.subr.mxu0 0.0
    %517 = vmatpush2.msra.mxu0 0.0
    %518 = vmatprep.mubr.f32.mxu0 0.0
    %519 = vmatmul.mubr.f32.gmra.mxu0 %v376
    %v520 = vpop.f32.mrf.mxu0
    %v521 = vadd.f32 %v452, %v520
    %v522 = vpop.f32.mrf.mxu0
    %523 = vdwg.mxu0
    %v524 = vmax.f32 %v521, 0.0
    %v525 = vadd.f32 %v524, %v193
    %526 = vmatprep.subr.mxu0 0.0
    %527 = vmatpush1.msra.mxu0 %v298
    %528 = vmatprep.subr.mxu0 0.0
    %529 = vmatpush1.msra.mxu0 %v297
    %530 = vmatprep.subr.mxu0 0.0
    %531 = vmatpush1.msra.mxu0 %v296
    %532 = vmatprep.subr.mxu0 0.0
    %533 = vmatpush1.msra.mxu0 %v295
    %534 = vmatprep.subr.mxu0 0.0
    %535 = vmatpush1.msra.mxu0 %v294
    %536 = vmatprep.subr.mxu0 0.0
    %537 = vmatpush1.msra.mxu0 %v293
    %538 = vmatprep.subr.mxu0 0.0
    %539 = vmatpush1.msra.mxu0 %v292
    %540 = vmatprep.subr.mxu0 0.0
    %541 = vmatpush1.msra.mxu0 %v291
    %542 = vmatprep.subr.mxu0 0.0
    %543 = vmatpush1.msra.mxu0 %v290
    %544 = vmatprep.subr.mxu0 0.0
    %545 = vmatpush1.msra.mxu0 %v289
    %546 = vmatprep.subr.mxu0 0.0
    %547 = vmatpush1.msra.mxu0 %v288
    %548 = vmatprep.subr.mxu0 0.0
    %549 = vmatpush1.msra.mxu0 %v287
    %550 = vmatprep.subr.mxu0 0.0
    %551 = vmatpush1.msra.mxu0 %v286
    %552 = vmatprep.subr.mxu0 0.0
    %553 = vmatpush1.msra.mxu0 %v285
    %554 = vmatprep.subr.mxu0 0.0
    %555 = vmatpush1.msra.mxu0 %v284
    %556 = vmatprep.subr.mxu0 0.0
    %557 = vmatpush1.msra.mxu0 %v283
    %558 = vmatprep.subr.mxu0 0.0
    %559 = vmatpush2.msra.mxu0 0.0
    %560 = vmatprep.subr.mxu0 0.0
    %561 = vmatpush2.msra.mxu0 0.0
    %562 = vmatprep.subr.mxu0 0.0
    %563 = vmatpush2.msra.mxu0 0.0
    %564 = vmatprep.subr.mxu0 0.0
    %565 = vmatpush2.msra.mxu0 0.0
    %566 = vmatprep.subr.mxu0 0.0
    %567 = vmatpush2.msra.mxu0 0.0
    %568 = vmatprep.subr.mxu0 0.0
    %569 = vmatpush2.msra.mxu0 0.0
    %570 = vmatprep.subr.mxu0 0.0
    %571 = vmatpush2.msra.mxu0 0.0
    %572 = vmatprep.subr.mxu0 0.0
    %573 = vmatpush2.msra.mxu0 0.0
    %574 = vmatprep.subr.mxu0 0.0
    %575 = vmatpush2.msra.mxu0 0.0
    %576 = vmatprep.subr.mxu0 0.0
    %577 = vmatpush2.msra.mxu0 0.0
    %578 = vmatprep.subr.mxu0 0.0
    %579 = vmatpush2.msra.mxu0 0.0
    %580 = vmatprep.subr.mxu0 0.0
    %581 = vmatpush2.msra.mxu0 0.0
    %582 = vmatprep.subr.mxu0 0.0
    %583 = vmatpush2.msra.mxu0 0.0
    %584 = vmatprep.subr.mxu0 0.0
    %585 = vmatpush2.msra.mxu0 0.0
    %586 = vmatprep.subr.mxu0 0.0
    %587 = vmatpush2.msra.mxu0 0.0
    %588 = vmatprep.subr.mxu0 0.0
    %589 = vmatpush2.msra.mxu0 0.0
    %590 = vmatprep.mubr.f32.mxu0 0.0
    %591 = vmatmul.mubr.f32.gmra.mxu0 %v447
    %v592 = vpop.f32.mrf.mxu0
    %v593 = vadd.f32 %v452, %v592
    %v594 = vpop.f32.mrf.mxu0
    %595 = vdwg.mxu0
    %v596 = vmax.f32 %v593, 0.0
    %v597 = vadd.f32 %v596, %v263
    %s598 = scalar_lea.vmem [#allocation7], 128
    %v599 = vld [vmem:[%s598] sm:$0xff]
    %v600 = vld [vmem:[%s598 + $0x8] sm:$0xff]
    %v601 = vld [vmem:[%s598 + $0x10] sm:$0xff]
    %v602 = vld [vmem:[%s598 + $0x18] sm:$0xff]
    %v603 = vld [vmem:[%s598 + $0x20] sm:$0xff]
    %v604 = vld [vmem:[%s598 + $0x28] sm:$0xff]
    %v605 = vld [vmem:[%s598 + $0x30] sm:$0xff]
    %v606 = vld [vmem:[%s598 + $0x38] sm:$0xff]
    %v607 = vld [vmem:[%s598 + $0x40] sm:$0xff]
    %v608 = vld [vmem:[%s598 + $0x48] sm:$0xff]
    %v609 = vld [vmem:[%s598 + $0x50] sm:$0xff]
    %v610 = vld [vmem:[%s598 + $0x58] sm:$0xff]
    %v611 = vld [vmem:[%s598 + $0x60] sm:$0xff]
    %v612 = vld [vmem:[%s598 + $0x68] sm:$0xff]
    %v613 = vld [vmem:[%s598 + $0x70] sm:$0xff]
    %v614 = vld [vmem:[%s598 + $0x78] sm:$0xff]
    %s615 = scalar_lea.vmem %s4, 1
    %v616 = vld [vmem:[%s615] sm:$0x1]
    %s617 = scalar_lea.vmem [#allocation8], 128
    %v618 = vld [vmem:[%s617] sm:$0xff]
    %v619 = vld [vmem:[%s617 + $0x8] sm:$0xff]
    %v620 = vld [vmem:[%s617 + $0x10] sm:$0xff]
    %v621 = vld [vmem:[%s617 + $0x18] sm:$0xff]
    %v622 = vld [vmem:[%s617 + $0x20] sm:$0xff]
    %v623 = vld [vmem:[%s617 + $0x28] sm:$0xff]
    %v624 = vld [vmem:[%s617 + $0x30] sm:$0xff]
    %v625 = vld [vmem:[%s617 + $0x38] sm:$0xff]
    %v626 = vld [vmem:[%s617 + $0x40] sm:$0xff]
    %v627 = vld [vmem:[%s617 + $0x48] sm:$0xff]
    %v628 = vld [vmem:[%s617 + $0x50] sm:$0xff]
    %v629 = vld [vmem:[%s617 + $0x58] sm:$0xff]
    %v630 = vld [vmem:[%s617 + $0x60] sm:$0xff]
    %v631 = vld [vmem:[%s617 + $0x68] sm:$0xff]
    %v632 = vld [vmem:[%s617 + $0x70] sm:$0xff]
    %v633 = vld [vmem:[%s617 + $0x78] sm:$0xff]
    %s634 = scalar_lea.vmem %s6, 1
    %v635 = vld [vmem:[%s634] sm:$0x1]
    %v637 = vlaneseq
    %v638 = vshrl.u32 %v637, 7
    %v639 = vsub.s32 0, %v638
    %v640 = vrot.slane %v616, %v639
    %642 = vmatprep.subr.mxu0 0.0
    %643 = vmatpush1.msra.mxu0 %v614
    %644 = vmatprep.subr.mxu0 0.0
    %645 = vmatpush1.msra.mxu0 %v613
    %646 = vmatprep.subr.mxu0 0.0
    %647 = vmatpush1.msra.mxu0 %v612
    %648 = vmatprep.subr.mxu0 0.0
    %649 = vmatpush1.msra.mxu0 %v611
    %650 = vmatprep.subr.mxu0 0.0
    %651 = vmatpush1.msra.mxu0 %v610
    %652 = vmatprep.subr.mxu0 0.0
    %653 = vmatpush1.msra.mxu0 %v609
    %654 = vmatprep.subr.mxu0 0.0
    %655 = vmatpush1.msra.mxu0 %v608
    %656 = vmatprep.subr.mxu0 0.0
    %657 = vmatpush1.msra.mxu0 %v607
    %658 = vmatprep.subr.mxu0 0.0
    %659 = vmatpush1.msra.mxu0 %v606
    %660 = vmatprep.subr.mxu0 0.0
    %661 = vmatpush1.msra.mxu0 %v605
    %662 = vmatprep.subr.mxu0 0.0
    %663 = vmatpush1.msra.mxu0 %v604
    %664 = vmatprep.subr.mxu0 0.0
    %665 = vmatpush1.msra.mxu0 %v603
    %666 = vmatprep.subr.mxu0 0.0
    %667 = vmatpush1.msra.mxu0 %v602
    %668 = vmatprep.subr.mxu0 0.0
    %669 = vmatpush1.msra.mxu0 %v601
    %670 = vmatprep.subr.mxu0 0.0
    %671 = vmatpush1.msra.mxu0 %v600
    %672 = vmatprep.subr.mxu0 0.0
    %673 = vmatpush1.msra.mxu0 %v599
    %674 = vmatprep.subr.mxu0 0.0
    %675 = vmatpush2.msra.mxu0 0.0
    %676 = vmatprep.subr.mxu0 0.0
    %677 = vmatpush2.msra.mxu0 0.0
    %678 = vmatprep.subr.mxu0 0.0
    %679 = vmatpush2.msra.mxu0 0.0
    %680 = vmatprep.subr.mxu0 0.0
    %681 = vmatpush2.msra.mxu0 0.0
    %682 = vmatprep.subr.mxu0 0.0
    %683 = vmatpush2.msra.mxu0 0.0
    %684 = vmatprep.subr.mxu0 0.0
    %685 = vmatpush2.msra.mxu0 0.0
    %686 = vmatprep.subr.mxu0 0.0
    %687 = vmatpush2.msra.mxu0 0.0
    %688 = vmatprep.subr.mxu0 0.0
    %689 = vmatpush2.msra.mxu0 0.0
    %690 = vmatprep.subr.mxu0 0.0
    %691 = vmatpush2.msra.mxu0 0.0
    %692 = vmatprep.subr.mxu0 0.0
    %693 = vmatpush2.msra.mxu0 0.0
    %694 = vmatprep.subr.mxu0 0.0
    %695 = vmatpush2.msra.mxu0 0.0
    %696 = vmatprep.subr.mxu0 0.0
    %697 = vmatpush2.msra.mxu0 0.0
    %698 = vmatprep.subr.mxu0 0.0
    %699 = vmatpush2.msra.mxu0 0.0
    %700 = vmatprep.subr.mxu0 0.0
    %701 = vmatpush2.msra.mxu0 0.0
    %702 = vmatprep.subr.mxu0 0.0
    %703 = vmatpush2.msra.mxu0 0.0
    %704 = vmatprep.subr.mxu0 0.0
    %705 = vmatpush2.msra.mxu0 0.0
    %706 = vmatprep.mubr.f32.mxu0 0.0
    %707 = vmatmul.mubr.f32.gmra.mxu0 %v525
    %v708 = vpop.f32.mrf.mxu0
    %v709 = vadd.f32 %v640, %v708
    %v710 = vpop.f32.mrf.mxu0
    %711 = vdwg.mxu0
    %v712 = vmax.f32 %v709, 0.0
    %713 = vmatprep.subr.mxu0 0.0
    %714 = vmatpush1.msra.mxu0 %v614
    %715 = vmatprep.subr.mxu0 0.0
    %716 = vmatpush1.msra.mxu0 %v613
    %717 = vmatprep.subr.mxu0 0.0
    %718 = vmatpush1.msra.mxu0 %v612
    %719 = vmatprep.subr.mxu0 0.0
    %720 = vmatpush1.msra.mxu0 %v611
    %721 = vmatprep.subr.mxu0 0.0
    %722 = vmatpush1.msra.mxu0 %v610
    %723 = vmatprep.subr.mxu0 0.0
    %724 = vmatpush1.msra.mxu0 %v609
    %725 = vmatprep.subr.mxu0 0.0
    %726 = vmatpush1.msra.mxu0 %v608
    %727 = vmatprep.subr.mxu0 0.0
    %728 = vmatpush1.msra.mxu0 %v607
    %729 = vmatprep.subr.mxu0 0.0
    %730 = vmatpush1.msra.mxu0 %v606
    %731 = vmatprep.subr.mxu0 0.0
    %732 = vmatpush1.msra.mxu0 %v605
    %733 = vmatprep.subr.mxu0 0.0
    %734 = vmatpush1.msra.mxu0 %v604
    %735 = vmatprep.subr.mxu0 0.0
    %736 = vmatpush1.msra.mxu0 %v603
    %737 = vmatprep.subr.mxu0 0.0
    %738 = vmatpush1.msra.mxu0 %v602
    %739 = vmatprep.subr.mxu0 0.0
    %740 = vmatpush1.msra.mxu0 %v601
    %741 = vmatprep.subr.mxu0 0.0
    %742 = vmatpush1.msra.mxu0 %v600
    %743 = vmatprep.subr.mxu0 0.0
    %744 = vmatpush1.msra.mxu0 %v599
    %745 = vmatprep.subr.mxu0 0.0
    %746 = vmatpush2.msra.mxu0 0.0
    %747 = vmatprep.subr.mxu0 0.0
    %748 = vmatpush2.msra.mxu0 0.0
    %749 = vmatprep.subr.mxu0 0.0
    %750 = vmatpush2.msra.mxu0 0.0
    %751 = vmatprep.subr.mxu0 0.0
    %752 = vmatpush2.msra.mxu0 0.0
    %753 = vmatprep.subr.mxu0 0.0
    %754 = vmatpush2.msra.mxu0 0.0
    %755 = vmatprep.subr.mxu0 0.0
    %756 = vmatpush2.msra.mxu0 0.0
    %757 = vmatprep.subr.mxu0 0.0
    %758 = vmatpush2.msra.mxu0 0.0
    %759 = vmatprep.subr.mxu0 0.0
    %760 = vmatpush2.msra.mxu0 0.0
    %761 = vmatprep.subr.mxu0 0.0
    %762 = vmatpush2.msra.mxu0 0.0
    %763 = vmatprep.subr.mxu0 0.0
    %764 = vmatpush2.msra.mxu0 0.0
    %765 = vmatprep.subr.mxu0 0.0
    %766 = vmatpush2.msra.mxu0 0.0
    %767 = vmatprep.subr.mxu0 0.0
    %768 = vmatpush2.msra.mxu0 0.0
    %769 = vmatprep.subr.mxu0 0.0
    %770 = vmatpush2.msra.mxu0 0.0
    %771 = vmatprep.subr.mxu0 0.0
    %772 = vmatpush2.msra.mxu0 0.0
    %773 = vmatprep.subr.mxu0 0.0
    %774 = vmatpush2.msra.mxu0 0.0
    %775 = vmatprep.subr.mxu0 0.0
    %776 = vmatpush2.msra.mxu0 0.0
    %777 = vmatprep.mubr.f32.mxu0 0.0
    %778 = vmatmul.mubr.f32.gmra.mxu0 %v597
    %v779 = vpop.f32.mrf.mxu0
    %v780 = vadd.f32 %v640, %v779
    %v781 = vpop.f32.mrf.mxu0
    %782 = vdwg.mxu0
    %v783 = vmax.f32 %v780, 0.0
    %v785 = vlaneseq
    %v786 = vshrl.u32 %v785, 7
    %v787 = vsub.s32 0, %v786
    %v788 = vrot.slane %v635, %v787
    %790 = vmatprep.subr.mxu0 0.0
    %791 = vmatpush1.msra.mxu0 %v633
    %792 = vmatprep.subr.mxu0 0.0
    %793 = vmatpush1.msra.mxu0 %v632
    %794 = vmatprep.subr.mxu0 0.0
    %795 = vmatpush1.msra.mxu0 %v631
    %796 = vmatprep.subr.mxu0 0.0
    %797 = vmatpush1.msra.mxu0 %v630
    %798 = vmatprep.subr.mxu0 0.0
    %799 = vmatpush1.msra.mxu0 %v629
    %800 = vmatprep.subr.mxu0 0.0
    %801 = vmatpush1.msra.mxu0 %v628
    %802 = vmatprep.subr.mxu0 0.0
    %803 = vmatpush1.msra.mxu0 %v627
    %804 = vmatprep.subr.mxu0 0.0
    %805 = vmatpush1.msra.mxu0 %v626
    %806 = vmatprep.subr.mxu0 0.0
    %807 = vmatpush1.msra.mxu0 %v625
    %808 = vmatprep.subr.mxu0 0.0
    %809 = vmatpush1.msra.mxu0 %v624
    %810 = vmatprep.subr.mxu0 0.0
    %811 = vmatpush1.msra.mxu0 %v623
    %812 = vmatprep.subr.mxu0 0.0
    %813 = vmatpush1.msra.mxu0 %v622
    %814 = vmatprep.subr.mxu0 0.0
    %815 = vmatpush1.msra.mxu0 %v621
    %816 = vmatprep.subr.mxu0 0.0
    %817 = vmatpush1.msra.mxu0 %v620
    %818 = vmatprep.subr.mxu0 0.0
    %819 = vmatpush1.msra.mxu0 %v619
    %820 = vmatprep.subr.mxu0 0.0
    %821 = vmatpush1.msra.mxu0 %v618
    %822 = vmatprep.subr.mxu0 0.0
    %823 = vmatpush2.msra.mxu0 0.0
    %824 = vmatprep.subr.mxu0 0.0
    %825 = vmatpush2.msra.mxu0 0.0
    %826 = vmatprep.subr.mxu0 0.0
    %827 = vmatpush2.msra.mxu0 0.0
    %828 = vmatprep.subr.mxu0 0.0
    %829 = vmatpush2.msra.mxu0 0.0
    %830 = vmatprep.subr.mxu0 0.0
    %831 = vmatpush2.msra.mxu0 0.0
    %832 = vmatprep.subr.mxu0 0.0
    %833 = vmatpush2.msra.mxu0 0.0
    %834 = vmatprep.subr.mxu0 0.0
    %835 = vmatpush2.msra.mxu0 0.0
    %836 = vmatprep.subr.mxu0 0.0
    %837 = vmatpush2.msra.mxu0 0.0
    %838 = vmatprep.subr.mxu0 0.0
    %839 = vmatpush2.msra.mxu0 0.0
    %840 = vmatprep.subr.mxu0 0.0
    %841 = vmatpush2.msra.mxu0 0.0
    %842 = vmatprep.subr.mxu0 0.0
    %843 = vmatpush2.msra.mxu0 0.0
    %844 = vmatprep.subr.mxu0 0.0
    %845 = vmatpush2.msra.mxu0 0.0
    %846 = vmatprep.subr.mxu0 0.0
    %847 = vmatpush2.msra.mxu0 0.0
    %848 = vmatprep.subr.mxu0 0.0
    %849 = vmatpush2.msra.mxu0 0.0
    %850 = vmatprep.subr.mxu0 0.0
    %851 = vmatpush2.msra.mxu0 0.0
    %852 = vmatprep.subr.mxu0 0.0
    %853 = vmatpush2.msra.mxu0 0.0
    %854 = vmatprep.mubr.f32.mxu0 0.0
    %855 = vmatmul.mubr.f32.gmra.mxu0 %v712
    %v856 = vpop.f32.mrf.mxu0
    %v857 = vadd.f32 %v788, %v856
    %v858 = vpop.f32.mrf.mxu0
    %859 = vdwg.mxu0
    %v860 = vmax.f32 %v857, 0.0
    %v861 = vadd.f32 %v860, %v525
    %862 = vmatprep.subr.mxu0 0.0
    %863 = vmatpush1.msra.mxu0 %v633
    %864 = vmatprep.subr.mxu0 0.0
    %865 = vmatpush1.msra.mxu0 %v632
    %866 = vmatprep.subr.mxu0 0.0
    %867 = vmatpush1.msra.mxu0 %v631
    %868 = vmatprep.subr.mxu0 0.0
    %869 = vmatpush1.msra.mxu0 %v630
    %870 = vmatprep.subr.mxu0 0.0
    %871 = vmatpush1.msra.mxu0 %v629
    %872 = vmatprep.subr.mxu0 0.0
    %873 = vmatpush1.msra.mxu0 %v628
    %874 = vmatprep.subr.mxu0 0.0
    %875 = vmatpush1.msra.mxu0 %v627
    %876 = vmatprep.subr.mxu0 0.0
    %877 = vmatpush1.msra.mxu0 %v626
    %878 = vmatprep.subr.mxu0 0.0
    %879 = vmatpush1.msra.mxu0 %v625
    %880 = vmatprep.subr.mxu0 0.0
    %881 = vmatpush1.msra.mxu0 %v624
    %882 = vmatprep.subr.mxu0 0.0
    %883 = vmatpush1.msra.mxu0 %v623
    %884 = vmatprep.subr.mxu0 0.0
    %885 = vmatpush1.msra.mxu0 %v622
    %886 = vmatprep.subr.mxu0 0.0
    %887 = vmatpush1.msra.mxu0 %v621
    %888 = vmatprep.subr.mxu0 0.0
    %889 = vmatpush1.msra.mxu0 %v620
    %890 = vmatprep.subr.mxu0 0.0
    %891 = vmatpush1.msra.mxu0 %v619
    %892 = vmatprep.subr.mxu0 0.0
    %893 = vmatpush1.msra.mxu0 %v618
    %894 = vmatprep.subr.mxu0 0.0
    %895 = vmatpush2.msra.mxu0 0.0
    %896 = vmatprep.subr.mxu0 0.0
    %897 = vmatpush2.msra.mxu0 0.0
    %898 = vmatprep.subr.mxu0 0.0
    %899 = vmatpush2.msra.mxu0 0.0
    %900 = vmatprep.subr.mxu0 0.0
    %901 = vmatpush2.msra.mxu0 0.0
    %902 = vmatprep.subr.mxu0 0.0
    %903 = vmatpush2.msra.mxu0 0.0
    %904 = vmatprep.subr.mxu0 0.0
    %905 = vmatpush2.msra.mxu0 0.0
    %906 = vmatprep.subr.mxu0 0.0
    %907 = vmatpush2.msra.mxu0 0.0
    %908 = vmatprep.subr.mxu0 0.0
    %909 = vmatpush2.msra.mxu0 0.0
    %910 = vmatprep.subr.mxu0 0.0
    %911 = vmatpush2.msra.mxu0 0.0
    %912 = vmatprep.subr.mxu0 0.0
    %913 = vmatpush2.msra.mxu0 0.0
    %914 = vmatprep.subr.mxu0 0.0
    %915 = vmatpush2.msra.mxu0 0.0
    %916 = vmatprep.subr.mxu0 0.0
    %917 = vmatpush2.msra.mxu0 0.0
    %918 = vmatprep.subr.mxu0 0.0
    %919 = vmatpush2.msra.mxu0 0.0
    %920 = vmatprep.subr.mxu0 0.0
    %921 = vmatpush2.msra.mxu0 0.0
    %922 = vmatprep.subr.mxu0 0.0
    %923 = vmatpush2.msra.mxu0 0.0
    %924 = vmatprep.subr.mxu0 0.0
    %925 = vmatpush2.msra.mxu0 0.0
    %926 = vmatprep.mubr.f32.mxu0 0.0
    %927 = vmatmul.mubr.f32.gmra.mxu0 %v783
    %v928 = vpop.f32.mrf.mxu0
    %v929 = vadd.f32 %v788, %v928
    %v930 = vpop.f32.mrf.mxu0
    %931 = vdwg.mxu0
    %v932 = vmax.f32 %v929, 0.0
    %v933 = vadd.f32 %v932, %v597
    %s934 = scalar_lea.vmem [#allocation7], 256
    %v935 = vld [vmem:[%s934] sm:$0xff]
    %v936 = vld [vmem:[%s934 + $0x8] sm:$0xff]
    %v937 = vld [vmem:[%s934 + $0x10] sm:$0xff]
    %v938 = vld [vmem:[%s934 + $0x18] sm:$0xff]
    %v939 = vld [vmem:[%s934 + $0x20] sm:$0xff]
    %v940 = vld [vmem:[%s934 + $0x28] sm:$0xff]
    %v941 = vld [vmem:[%s934 + $0x30] sm:$0xff]
    %v942 = vld [vmem:[%s934 + $0x38] sm:$0xff]
    %v943 = vld [vmem:[%s934 + $0x40] sm:$0xff]
    %v944 = vld [vmem:[%s934 + $0x48] sm:$0xff]
    %v945 = vld [vmem:[%s934 + $0x50] sm:$0xff]
    %v946 = vld [vmem:[%s934 + $0x58] sm:$0xff]
    %v947 = vld [vmem:[%s934 + $0x60] sm:$0xff]
    %v948 = vld [vmem:[%s934 + $0x68] sm:$0xff]
    %v949 = vld [vmem:[%s934 + $0x70] sm:$0xff]
    %v950 = vld [vmem:[%s934 + $0x78] sm:$0xff]
    %s951 = scalar_lea.vmem %s4, 2
    %v952 = vld [vmem:[%s951] sm:$0x1]
    %s953 = scalar_lea.vmem [#allocation8], 256
    %v954 = vld [vmem:[%s953] sm:$0xff]
    %v955 = vld [vmem:[%s953 + $0x8] sm:$0xff]
    %v956 = vld [vmem:[%s953 + $0x10] sm:$0xff]
    %v957 = vld [vmem:[%s953 + $0x18] sm:$0xff]
    %v958 = vld [vmem:[%s953 + $0x20] sm:$0xff]
    %v959 = vld [vmem:[%s953 + $0x28] sm:$0xff]
    %v960 = vld [vmem:[%s953 + $0x30] sm:$0xff]
    %v961 = vld [vmem:[%s953 + $0x38] sm:$0xff]
    %v962 = vld [vmem:[%s953 + $0x40] sm:$0xff]
    %v963 = vld [vmem:[%s953 + $0x48] sm:$0xff]
    %v964 = vld [vmem:[%s953 + $0x50] sm:$0xff]
    %v965 = vld [vmem:[%s953 + $0x58] sm:$0xff]
    %v966 = vld [vmem:[%s953 + $0x60] sm:$0xff]
    %v967 = vld [vmem:[%s953 + $0x68] sm:$0xff]
    %v968 = vld [vmem:[%s953 + $0x70] sm:$0xff]
    %v969 = vld [vmem:[%s953 + $0x78] sm:$0xff]
    %s970 = scalar_lea.vmem %s6, 2
    %v971 = vld [vmem:[%s970] sm:$0x1]
    %v973 = vlaneseq
    %v974 = vshrl.u32 %v973, 7
    %v975 = vsub.s32 0, %v974
    %v976 = vrot.slane %v952, %v975
    %978 = vmatprep.subr.mxu0 0.0
    %979 = vmatpush1.msra.mxu0 %v950
    %980 = vmatprep.subr.mxu0 0.0
    %981 = vmatpush1.msra.mxu0 %v949
    %982 = vmatprep.subr.mxu0 0.0
    %983 = vmatpush1.msra.mxu0 %v948
    %984 = vmatprep.subr.mxu0 0.0
    %985 = vmatpush1.msra.mxu0 %v947
    %986 = vmatprep.subr.mxu0 0.0
    %987 = vmatpush1.msra.mxu0 %v946
    %988 = vmatprep.subr.mxu0 0.0
    %989 = vmatpush1.msra.mxu0 %v945
    %990 = vmatprep.subr.mxu0 0.0
    %991 = vmatpush1.msra.mxu0 %v944
    %992 = vmatprep.subr.mxu0 0.0
    %993 = vmatpush1.msra.mxu0 %v943
    %994 = vmatprep.subr.mxu0 0.0
    %995 = vmatpush1.msra.mxu0 %v942
    %996 = vmatprep.subr.mxu0 0.0
    %997 = vmatpush1.msra.mxu0 %v941
    %998 = vmatprep.subr.mxu0 0.0
    %999 = vmatpush1.msra.mxu0 %v940
    %1000 = vmatprep.subr.mxu0 0.0
    %1001 = vmatpush1.msra.mxu0 %v939
    %1002 = vmatprep.subr.mxu0 0.0
    %1003 = vmatpush1.msra.mxu0 %v938
    %1004 = vmatprep.subr.mxu0 0.0
    %1005 = vmatpush1.msra.mxu0 %v937
    %1006 = vmatprep.subr.mxu0 0.0
    %1007 = vmatpush1.msra.mxu0 %v936
    %1008 = vmatprep.subr.mxu0 0.0
    %1009 = vmatpush1.msra.mxu0 %v935
    %1010 = vmatprep.subr.mxu0 0.0
    %1011 = vmatpush2.msra.mxu0 0.0
    %1012 = vmatprep.subr.mxu0 0.0
    %1013 = vmatpush2.msra.mxu0 0.0
    %1014 = vmatprep.subr.mxu0 0.0
    %1015 = vmatpush2.msra.mxu0 0.0
    %1016 = vmatprep.subr.mxu0 0.0
    %1017 = vmatpush2.msra.mxu0 0.0
    %1018 = vmatprep.subr.mxu0 0.0
    %1019 = vmatpush2.msra.mxu0 0.0
    %1020 = vmatprep.subr.mxu0 0.0
    %1021 = vmatpush2.msra.mxu0 0.0
    %1022 = vmatprep.subr.mxu0 0.0
    %1023 = vmatpush2.msra.mxu0 0.0
    %1024 = vmatprep.subr.mxu0 0.0
    %1025 = vmatpush2.msra.mxu0 0.0
    %1026 = vmatprep.subr.mxu0 0.0
    %1027 = vmatpush2.msra.mxu0 0.0
    %1028 = vmatprep.subr.mxu0 0.0
    %1029 = vmatpush2.msra.mxu0 0.0
    %1030 = vmatprep.subr.mxu0 0.0
    %1031 = vmatpush2.msra.mxu0 0.0
    %1032 = vmatprep.subr.mxu0 0.0
    %1033 = vmatpush2.msra.mxu0 0.0
    %1034 = vmatprep.subr.mxu0 0.0
    %1035 = vmatpush2.msra.mxu0 0.0
    %1036 = vmatprep.subr.mxu0 0.0
    %1037 = vmatpush2.msra.mxu0 0.0
    %1038 = vmatprep.subr.mxu0 0.0
    %1039 = vmatpush2.msra.mxu0 0.0
    %1040 = vmatprep.subr.mxu0 0.0
    %1041 = vmatpush2.msra.mxu0 0.0
    %1042 = vmatprep.mubr.f32.mxu0 0.0
    %1043 = vmatmul.mubr.f32.gmra.mxu0 %v861
    %v1044 = vpop.f32.mrf.mxu0
    %v1045 = vadd.f32 %v976, %v1044
    %v1046 = vpop.f32.mrf.mxu0
    %1047 = vdwg.mxu0
    %v1048 = vmax.f32 %v1045, 0.0
    %1049 = vmatprep.subr.mxu0 0.0
    %1050 = vmatpush1.msra.mxu0 %v950
    %1051 = vmatprep.subr.mxu0 0.0
    %1052 = vmatpush1.msra.mxu0 %v949
    %1053 = vmatprep.subr.mxu0 0.0
    %1054 = vmatpush1.msra.mxu0 %v948
    %1055 = vmatprep.subr.mxu0 0.0
    %1056 = vmatpush1.msra.mxu0 %v947
    %1057 = vmatprep.subr.mxu0 0.0
    %1058 = vmatpush1.msra.mxu0 %v946
    %1059 = vmatprep.subr.mxu0 0.0
    %1060 = vmatpush1.msra.mxu0 %v945
    %1061 = vmatprep.subr.mxu0 0.0
    %1062 = vmatpush1.msra.mxu0 %v944
    %1063 = vmatprep.subr.mxu0 0.0
    %1064 = vmatpush1.msra.mxu0 %v943
    %1065 = vmatprep.subr.mxu0 0.0
    %1066 = vmatpush1.msra.mxu0 %v942
    %1067 = vmatprep.subr.mxu0 0.0
    %1068 = vmatpush1.msra.mxu0 %v941
    %1069 = vmatprep.subr.mxu0 0.0
    %1070 = vmatpush1.msra.mxu0 %v940
    %1071 = vmatprep.subr.mxu0 0.0
    %1072 = vmatpush1.msra.mxu0 %v939
    %1073 = vmatprep.subr.mxu0 0.0
    %1074 = vmatpush1.msra.mxu0 %v938
    %1075 = vmatprep.subr.mxu0 0.0
    %1076 = vmatpush1.msra.mxu0 %v937
    %1077 = vmatprep.subr.mxu0 0.0
    %1078 = vmatpush1.msra.mxu0 %v936
    %1079 = vmatprep.subr.mxu0 0.0
    %1080 = vmatpush1.msra.mxu0 %v935
    %1081 = vmatprep.subr.mxu0 0.0
    %1082 = vmatpush2.msra.mxu0 0.0
    %1083 = vmatprep.subr.mxu0 0.0
    %1084 = vmatpush2.msra.mxu0 0.0
    %1085 = vmatprep.subr.mxu0 0.0
    %1086 = vmatpush2.msra.mxu0 0.0
    %1087 = vmatprep.subr.mxu0 0.0
    %1088 = vmatpush2.msra.mxu0 0.0
    %1089 = vmatprep.subr.mxu0 0.0
    %1090 = vmatpush2.msra.mxu0 0.0
    %1091 = vmatprep.subr.mxu0 0.0
    %1092 = vmatpush2.msra.mxu0 0.0
    %1093 = vmatprep.subr.mxu0 0.0
    %1094 = vmatpush2.msra.mxu0 0.0
    %1095 = vmatprep.subr.mxu0 0.0
    %1096 = vmatpush2.msra.mxu0 0.0
    %1097 = vmatprep.subr.mxu0 0.0
    %1098 = vmatpush2.msra.mxu0 0.0
    %1099 = vmatprep.subr.mxu0 0.0
    %1100 = vmatpush2.msra.mxu0 0.0
    %1101 = vmatprep.subr.mxu0 0.0
    %1102 = vmatpush2.msra.mxu0 0.0
    %1103 = vmatprep.subr.mxu0 0.0
    %1104 = vmatpush2.msra.mxu0 0.0
    %1105 = vmatprep.subr.mxu0 0.0
    %1106 = vmatpush2.msra.mxu0 0.0
    %1107 = vmatprep.subr.mxu0 0.0
    %1108 = vmatpush2.msra.mxu0 0.0
    %1109 = vmatprep.subr.mxu0 0.0
    %1110 = vmatpush2.msra.mxu0 0.0
    %1111 = vmatprep.subr.mxu0 0.0
    %1112 = vmatpush2.msra.mxu0 0.0
    %1113 = vmatprep.mubr.f32.mxu0 0.0
    %1114 = vmatmul.mubr.f32.gmra.mxu0 %v933
    %v1115 = vpop.f32.mrf.mxu0
    %v1116 = vadd.f32 %v976, %v1115
    %v1117 = vpop.f32.mrf.mxu0
    %1118 = vdwg.mxu0
    %v1119 = vmax.f32 %v1116, 0.0
    %v1121 = vlaneseq
    %v1122 = vshrl.u32 %v1121, 7
    %v1123 = vsub.s32 0, %v1122
    %v1124 = vrot.slane %v971, %v1123
    %1126 = vmatprep.subr.mxu0 0.0
    %1127 = vmatpush1.msra.mxu0 %v969
    %1128 = vmatprep.subr.mxu0 0.0
    %1129 = vmatpush1.msra.mxu0 %v968
    %1130 = vmatprep.subr.mxu0 0.0
    %1131 = vmatpush1.msra.mxu0 %v967
    %1132 = vmatprep.subr.mxu0 0.0
    %1133 = vmatpush1.msra.mxu0 %v966
    %1134 = vmatprep.subr.mxu0 0.0
    %1135 = vmatpush1.msra.mxu0 %v965
    %1136 = vmatprep.subr.mxu0 0.0
    %1137 = vmatpush1.msra.mxu0 %v964
    %1138 = vmatprep.subr.mxu0 0.0
    %1139 = vmatpush1.msra.mxu0 %v963
    %1140 = vmatprep.subr.mxu0 0.0
    %1141 = vmatpush1.msra.mxu0 %v962
    %1142 = vmatprep.subr.mxu0 0.0
    %1143 = vmatpush1.msra.mxu0 %v961
    %1144 = vmatprep.subr.mxu0 0.0
    %1145 = vmatpush1.msra.mxu0 %v960
    %1146 = vmatprep.subr.mxu0 0.0
    %1147 = vmatpush1.msra.mxu0 %v959
    %1148 = vmatprep.subr.mxu0 0.0
    %1149 = vmatpush1.msra.mxu0 %v958
    %1150 = vmatprep.subr.mxu0 0.0
    %1151 = vmatpush1.msra.mxu0 %v957
    %1152 = vmatprep.subr.mxu0 0.0
    %1153 = vmatpush1.msra.mxu0 %v956
    %1154 = vmatprep.subr.mxu0 0.0
    %1155 = vmatpush1.msra.mxu0 %v955
    %1156 = vmatprep.subr.mxu0 0.0
    %1157 = vmatpush1.msra.mxu0 %v954
    %1158 = vmatprep.subr.mxu0 0.0
    %1159 = vmatpush2.msra.mxu0 0.0
    %1160 = vmatprep.subr.mxu0 0.0
    %1161 = vmatpush2.msra.mxu0 0.0
    %1162 = vmatprep.subr.mxu0 0.0
    %1163 = vmatpush2.msra.mxu0 0.0
    %1164 = vmatprep.subr.mxu0 0.0
    %1165 = vmatpush2.msra.mxu0 0.0
    %1166 = vmatprep.subr.mxu0 0.0
    %1167 = vmatpush2.msra.mxu0 0.0
    %1168 = vmatprep.subr.mxu0 0.0
    %1169 = vmatpush2.msra.mxu0 0.0
    %1170 = vmatprep.subr.mxu0 0.0
    %1171 = vmatpush2.msra.mxu0 0.0
    %1172 = vmatprep.subr.mxu0 0.0
    %1173 = vmatpush2.msra.mxu0 0.0
    %1174 = vmatprep.subr.mxu0 0.0
    %1175 = vmatpush2.msra.mxu0 0.0
    %1176 = vmatprep.subr.mxu0 0.0
    %1177 = vmatpush2.msra.mxu0 0.0
    %1178 = vmatprep.subr.mxu0 0.0
    %1179 = vmatpush2.msra.mxu0 0.0
    %1180 = vmatprep.subr.mxu0 0.0
    %1181 = vmatpush2.msra.mxu0 0.0
    %1182 = vmatprep.subr.mxu0 0.0
    %1183 = vmatpush2.msra.mxu0 0.0
    %1184 = vmatprep.subr.mxu0 0.0
    %1185 = vmatpush2.msra.mxu0 0.0
    %1186 = vmatprep.subr.mxu0 0.0
    %1187 = vmatpush2.msra.mxu0 0.0
    %1188 = vmatprep.subr.mxu0 0.0
    %1189 = vmatpush2.msra.mxu0 0.0
    %1190 = vmatprep.mubr.f32.mxu0 0.0
    %1191 = vmatmul.mubr.f32.gmra.mxu0 %v1048
    %v1192 = vpop.f32.mrf.mxu0
    %v1193 = vadd.f32 %v1124, %v1192
    %v1194 = vpop.f32.mrf.mxu0
    %1195 = vdwg.mxu0
    %v1196 = vmax.f32 %v1193, 0.0
    %v1197 = vadd.f32 %v1196, %v861
    %1198 = vmatprep.subr.mxu0 0.0
    %1199 = vmatpush1.msra.mxu0 %v969
    %1200 = vmatprep.subr.mxu0 0.0
    %1201 = vmatpush1.msra.mxu0 %v968
    %1202 = vmatprep.subr.mxu0 0.0
    %1203 = vmatpush1.msra.mxu0 %v967
    %1204 = vmatprep.subr.mxu0 0.0
    %1205 = vmatpush1.msra.mxu0 %v966
    %1206 = vmatprep.subr.mxu0 0.0
    %1207 = vmatpush1.msra.mxu0 %v965
    %1208 = vmatprep.subr.mxu0 0.0
    %1209 = vmatpush1.msra.mxu0 %v964
    %1210 = vmatprep.subr.mxu0 0.0
    %1211 = vmatpush1.msra.mxu0 %v963
    %1212 = vmatprep.subr.mxu0 0.0
    %1213 = vmatpush1.msra.mxu0 %v962
    %1214 = vmatprep.subr.mxu0 0.0
    %1215 = vmatpush1.msra.mxu0 %v961
    %1216 = vmatprep.subr.mxu0 0.0
    %1217 = vmatpush1.msra.mxu0 %v960
    %1218 = vmatprep.subr.mxu0 0.0
    %1219 = vmatpush1.msra.mxu0 %v959
    %1220 = vmatprep.subr.mxu0 0.0
    %1221 = vmatpush1.msra.mxu0 %v958
    %1222 = vmatprep.subr.mxu0 0.0
    %1223 = vmatpush1.msra.mxu0 %v957
    %1224 = vmatprep.subr.mxu0 0.0
    %1225 = vmatpush1.msra.mxu0 %v956
    %1226 = vmatprep.subr.mxu0 0.0
    %1227 = vmatpush1.msra.mxu0 %v955
    %1228 = vmatprep.subr.mxu0 0.0
    %1229 = vmatpush1.msra.mxu0 %v954
    %1230 = vmatprep.subr.mxu0 0.0
    %1231 = vmatpush2.msra.mxu0 0.0
    %1232 = vmatprep.subr.mxu0 0.0
    %1233 = vmatpush2.msra.mxu0 0.0
    %1234 = vmatprep.subr.mxu0 0.0
    %1235 = vmatpush2.msra.mxu0 0.0
    %1236 = vmatprep.subr.mxu0 0.0
    %1237 = vmatpush2.msra.mxu0 0.0
    %1238 = vmatprep.subr.mxu0 0.0
    %1239 = vmatpush2.msra.mxu0 0.0
    %1240 = vmatprep.subr.mxu0 0.0
    %1241 = vmatpush2.msra.mxu0 0.0
    %1242 = vmatprep.subr.mxu0 0.0
    %1243 = vmatpush2.msra.mxu0 0.0
    %1244 = vmatprep.subr.mxu0 0.0
    %1245 = vmatpush2.msra.mxu0 0.0
    %1246 = vmatprep.subr.mxu0 0.0
    %1247 = vmatpush2.msra.mxu0 0.0
    %1248 = vmatprep.subr.mxu0 0.0
    %1249 = vmatpush2.msra.mxu0 0.0
    %1250 = vmatprep.subr.mxu0 0.0
    %1251 = vmatpush2.msra.mxu0 0.0
    %1252 = vmatprep.subr.mxu0 0.0
    %1253 = vmatpush2.msra.mxu0 0.0
    %1254 = vmatprep.subr.mxu0 0.0
    %1255 = vmatpush2.msra.mxu0 0.0
    %1256 = vmatprep.subr.mxu0 0.0
    %1257 = vmatpush2.msra.mxu0 0.0
    %1258 = vmatprep.subr.mxu0 0.0
    %1259 = vmatpush2.msra.mxu0 0.0
    %1260 = vmatprep.subr.mxu0 0.0
    %1261 = vmatpush2.msra.mxu0 0.0
    %1262 = vmatprep.mubr.f32.mxu0 0.0
    %1263 = vmatmul.mubr.f32.gmra.mxu0 %v1119
    %v1264 = vpop.f32.mrf.mxu0
    %v1265 = vadd.f32 %v1124, %v1264
    %v1266 = vpop.f32.mrf.mxu0
    %1267 = vdwg.mxu0
    %v1268 = vmax.f32 %v1265, 0.0
    %v1269 = vadd.f32 %v1268, %v933
    %v1270 = vld [vmem:[#allocation10] sm:$0xff]
    %v1271 = vld [vmem:[#allocation10 + $0x8] sm:$0xff]
    %v1272 = vld [vmem:[#allocation10 + $0x10] sm:$0xff]
    %v1273 = vld [vmem:[#allocation10 + $0x18] sm:$0xff]
    %v1274 = vld [vmem:[#allocation10 + $0x20] sm:$0xff]
    %v1275 = vld [vmem:[#allocation10 + $0x28] sm:$0xff]
    %v1276 = vld [vmem:[#allocation10 + $0x30] sm:$0xff]
    %v1277 = vld [vmem:[#allocation10 + $0x38] sm:$0xff]
    %v1278 = vld [vmem:[#allocation10 + $0x40] sm:$0xff]
    %v1279 = vld [vmem:[#allocation10 + $0x48] sm:$0xff]
    %v1280 = vld [vmem:[#allocation10 + $0x50] sm:$0xff]
    %v1281 = vld [vmem:[#allocation10 + $0x58] sm:$0xff]
    %v1282 = vld [vmem:[#allocation10 + $0x60] sm:$0xff]
    %v1283 = vld [vmem:[#allocation10 + $0x68] sm:$0xff]
    %v1284 = vld [vmem:[#allocation10 + $0x70] sm:$0xff]
    %v1285 = vld [vmem:[#allocation10 + $0x78] sm:$0xff]
    %v1286 = vld [vmem:[%s8] sm:$0x1]
    %v1288 = vlaneseq
    %v1289 = vshrl.u32 %v1288, 7
    %v1290 = vsub.s32 0, %v1289
    %v1291 = vrot.slane %v1286, %v1290
    %1293 = vmatprep.subr.mxu0 0.0
    %1294 = vmatpush1.msra.mxu0 %v1285
    %1295 = vmatprep.subr.mxu0 0.0
    %1296 = vmatpush1.msra.mxu0 %v1284
    %1297 = vmatprep.subr.mxu0 0.0
    %1298 = vmatpush1.msra.mxu0 %v1283
    %1299 = vmatprep.subr.mxu0 0.0
    %1300 = vmatpush1.msra.mxu0 %v1282
    %1301 = vmatprep.subr.mxu0 0.0
    %1302 = vmatpush1.msra.mxu0 %v1281
    %1303 = vmatprep.subr.mxu0 0.0
    %1304 = vmatpush1.msra.mxu0 %v1280
    %1305 = vmatprep.subr.mxu0 0.0
    %1306 = vmatpush1.msra.mxu0 %v1279
    %1307 = vmatprep.subr.mxu0 0.0
    %1308 = vmatpush1.msra.mxu0 %v1278
    %1309 = vmatprep.subr.mxu0 0.0
    %1310 = vmatpush1.msra.mxu0 %v1277
    %1311 = vmatprep.subr.mxu0 0.0
    %1312 = vmatpush1.msra.mxu0 %v1276
    %1313 = vmatprep.subr.mxu0 0.0
    %1314 = vmatpush1.msra.mxu0 %v1275
    %1315 = vmatprep.subr.mxu0 0.0
    %1316 = vmatpush1.msra.mxu0 %v1274
    %1317 = vmatprep.subr.mxu0 0.0
    %1318 = vmatpush1.msra.mxu0 %v1273
    %1319 = vmatprep.subr.mxu0 0.0
    %1320 = vmatpush1.msra.mxu0 %v1272
    %1321 = vmatprep.subr.mxu0 0.0
    %1322 = vmatpush1.msra.mxu0 %v1271
    %1323 = vmatprep.subr.mxu0 0.0
    %1324 = vmatpush1.msra.mxu0 %v1270
    %1325 = vmatprep.subr.mxu0 0.0
    %1326 = vmatpush2.msra.mxu0 0.0
    %1327 = vmatprep.subr.mxu0 0.0
    %1328 = vmatpush2.msra.mxu0 0.0
    %1329 = vmatprep.subr.mxu0 0.0
    %1330 = vmatpush2.msra.mxu0 0.0
    %1331 = vmatprep.subr.mxu0 0.0
    %1332 = vmatpush2.msra.mxu0 0.0
    %1333 = vmatprep.subr.mxu0 0.0
    %1334 = vmatpush2.msra.mxu0 0.0
    %1335 = vmatprep.subr.mxu0 0.0
    %1336 = vmatpush2.msra.mxu0 0.0
    %1337 = vmatprep.subr.mxu0 0.0
    %1338 = vmatpush2.msra.mxu0 0.0
    %1339 = vmatprep.subr.mxu0 0.0
    %1340 = vmatpush2.msra.mxu0 0.0
    %1341 = vmatprep.subr.mxu0 0.0
    %1342 = vmatpush2.msra.mxu0 0.0
    %1343 = vmatprep.subr.mxu0 0.0
    %1344 = vmatpush2.msra.mxu0 0.0
    %1345 = vmatprep.subr.mxu0 0.0
    %1346 = vmatpush2.msra.mxu0 0.0
    %1347 = vmatprep.subr.mxu0 0.0
    %1348 = vmatpush2.msra.mxu0 0.0
    %1349 = vmatprep.subr.mxu0 0.0
    %1350 = vmatpush2.msra.mxu0 0.0
    %1351 = vmatprep.subr.mxu0 0.0
    %1352 = vmatpush2.msra.mxu0 0.0
    %1353 = vmatprep.subr.mxu0 0.0
    %1354 = vmatpush2.msra.mxu0 0.0
    %1355 = vmatprep.subr.mxu0 0.0
    %1356 = vmatpush2.msra.mxu0 0.0
    %1357 = vmatprep.mubr.f32.mxu0 0.0
    %1358 = vmatmul.mubr.f32.gmra.mxu0 %v1197
    %v1359 = vpop.f32.mrf.mxu0
    %v1360 = vadd.f32 %v1291, %v1359
    %v1361 = vpop.f32.mrf.mxu0
    %1362 = vdwg.mxu0
    %1363 = vmatprep.subr.mxu0 0.0
    %1364 = vmatpush1.msra.mxu0 %v1285
    %1365 = vmatprep.subr.mxu0 0.0
    %1366 = vmatpush1.msra.mxu0 %v1284
    %1367 = vmatprep.subr.mxu0 0.0
    %1368 = vmatpush1.msra.mxu0 %v1283
    %1369 = vmatprep.subr.mxu0 0.0
    %1370 = vmatpush1.msra.mxu0 %v1282
    %1371 = vmatprep.subr.mxu0 0.0
    %1372 = vmatpush1.msra.mxu0 %v1281
    %1373 = vmatprep.subr.mxu0 0.0
    %1374 = vmatpush1.msra.mxu0 %v1280
    %1375 = vmatprep.subr.mxu0 0.0
    %1376 = vmatpush1.msra.mxu0 %v1279
    %1377 = vmatprep.subr.mxu0 0.0
    %1378 = vmatpush1.msra.mxu0 %v1278
    %1379 = vmatprep.subr.mxu0 0.0
    %1380 = vmatpush1.msra.mxu0 %v1277
    %1381 = vmatprep.subr.mxu0 0.0
    %1382 = vmatpush1.msra.mxu0 %v1276
    %1383 = vmatprep.subr.mxu0 0.0
    %1384 = vmatpush1.msra.mxu0 %v1275
    %1385 = vmatprep.subr.mxu0 0.0
    %1386 = vmatpush1.msra.mxu0 %v1274
    %1387 = vmatprep.subr.mxu0 0.0
    %1388 = vmatpush1.msra.mxu0 %v1273
    %1389 = vmatprep.subr.mxu0 0.0
    %1390 = vmatpush1.msra.mxu0 %v1272
    %1391 = vmatprep.subr.mxu0 0.0
    %1392 = vmatpush1.msra.mxu0 %v1271
    %1393 = vmatprep.subr.mxu0 0.0
    %1394 = vmatpush1.msra.mxu0 %v1270
    %1395 = vmatprep.subr.mxu0 0.0
    %1396 = vmatpush2.msra.mxu0 0.0
    %1397 = vmatprep.subr.mxu0 0.0
    %1398 = vmatpush2.msra.mxu0 0.0
    %1399 = vmatprep.subr.mxu0 0.0
    %1400 = vmatpush2.msra.mxu0 0.0
    %1401 = vmatprep.subr.mxu0 0.0
    %1402 = vmatpush2.msra.mxu0 0.0
    %1403 = vmatprep.subr.mxu0 0.0
    %1404 = vmatpush2.msra.mxu0 0.0
    %1405 = vmatprep.subr.mxu0 0.0
    %1406 = vmatpush2.msra.mxu0 0.0
    %1407 = vmatprep.subr.mxu0 0.0
    %1408 = vmatpush2.msra.mxu0 0.0
    %1409 = vmatprep.subr.mxu0 0.0
    %1410 = vmatpush2.msra.mxu0 0.0
    %1411 = vmatprep.subr.mxu0 0.0
    %1412 = vmatpush2.msra.mxu0 0.0
    %1413 = vmatprep.subr.mxu0 0.0
    %1414 = vmatpush2.msra.mxu0 0.0
    %1415 = vmatprep.subr.mxu0 0.0
    %1416 = vmatpush2.msra.mxu0 0.0
    %1417 = vmatprep.subr.mxu0 0.0
    %1418 = vmatpush2.msra.mxu0 0.0
    %1419 = vmatprep.subr.mxu0 0.0
    %1420 = vmatpush2.msra.mxu0 0.0
    %1421 = vmatprep.subr.mxu0 0.0
    %1422 = vmatpush2.msra.mxu0 0.0
    %1423 = vmatprep.subr.mxu0 0.0
    %1424 = vmatpush2.msra.mxu0 0.0
    %1425 = vmatprep.subr.mxu0 0.0
    %1426 = vmatpush2.msra.mxu0 0.0
    %1427 = vmatprep.mubr.f32.mxu0 0.0
    %1428 = vmatmul.mubr.f32.gmra.mxu0 %v1269
    %v1429 = vpop.f32.mrf.mxu0
    %v1430 = vadd.f32 %v1291, %v1429
    %v1431 = vpop.f32.mrf.mxu0
    %1432 = vdwg.mxu0
    %1433 = vst [vmem:[#allocation11] sm:$0xff] %v1360
    %1434 = vst [vmem:[#allocation11 + $0x8] sm:$0xff] %v1430
    // Predicated region
    $region58: #{tpu_custom_call.1} parent=1 // pred_check
      _
    $region59: #{tpu_custom_call.1} parent=1 // pred_check_branch
      %1436 = sbr.rel (0) target = $region61
    $region60: #{tpu_custom_call.1} parent=1 // pred_region
      %s1438 = ssub.s32 256, 256
      %1439 = vsyncadd [#allocation4], %s1438
      %s1440 = sshll.u32 [#allocation11], 4
      %s1441 = int_to_ptr.vmem [resolvable:$true] %s1440
      %1446 = dma.vmem_to_hbm [thread:$0]  %s1441, 256, %s9, [#allocation4], 128, 128, 8
    $region61: #{tpu_custom_call.1} parent=1 // pred_fallthru
      _
    // Predicated region
    $region62: #{tpu_custom_call.1} parent=1 // pred_check
      _
    $region63: #{tpu_custom_call.1} parent=1 // pred_check_branch
      %1448 = sbr.rel (0) target = $region65
    $region64: #{tpu_custom_call.1} parent=1 // pred_region
      %1449 = dma.done [#allocation4], 256
    $region65: #{tpu_custom_call.1} parent=1 // pred_fallthru
      _
    %1450 = vsyncpa [#allocation3], 1
    %1451 = vsyncpa [#allocation6], 1
    %1452 = vsyncpa [#allocation9], 1
    %1453 = vsyncpa [#allocation4], 1

</llo_original>
